<compile_context>
chip_gen: v5e
topology: v5e:2x2
jax: 0.10.0
libtpu: 0.0.40
codegen_flags: <defaults>
</compile_context>

<pallas_src>
import functools

import jax
import jax.numpy as jnp
import numpy as np
from jax import lax
from jax.experimental import pallas as pl
from jax.experimental.pallas import tpu as pltpu

KSIZE = 7   # SpatialAttention kernel_size=7
PAD = 3     # padding = 3 for kernel_size 7
_MIB = 1024 * 1024


def _attention_kernel(x_ref, y_ref, w1t_ref, w2t_ref, wc_ref, o_ref, *, H, W):
    """One grid step = one (Bb, C, H*W) batch block.

    x_ref / y_ref / o_ref : (Bb, C, H*W)  VMEM  (lane-dense spatial axis)
    w1t_ref               : (C, Cr)       VMEM  (fc1 weight, pre-transposed)
    w2t_ref               : (Cr, C)       VMEM  (fc2 weight, pre-transposed)
    wc_ref                : (2*49,)       SMEM  (7x7 conv taps: [avg | max])
    """
    x = x_ref[...].astype(jnp.float32)
    y = y_ref[...].astype(jnp.float32)
    s = x + y                                               # add_x_y
    Bb, C, HW = s.shape

    # ---------------- Channel attention ----------------
    # AdaptiveAvg/MaxPool2d(1): reduce over the (lane) spatial axis -> (Bb, C)
    avg_c = jnp.mean(s, axis=2)
    max_c = jnp.max(s, axis=2)
    pooled = jnp.concatenate([avg_c, max_c], axis=0)        # (2*Bb, C)

    w1t = w1t_ref[...].astype(jnp.float32)                  # (C, Cr)
    w2t = w2t_ref[...].astype(jnp.float32)                  # (Cr, C)
    h = jnp.maximum(
        jnp.dot(pooled, w1t, preferred_element_type=jnp.float32), 0.0)   # (2Bb, Cr)
    o2 = jnp.dot(h, w2t, preferred_element_type=jnp.float32)             # (2Bb, C)
    ca_gate = jax.nn.sigmoid(o2[:Bb] + o2[Bb:])             # avg branch + max branch
    # TODO(synk): ca_gate is lane-major; the (Bb, C, 1) broadcast below costs a
    # small lane->sublane relayout.  A sublane-major MLP would remove it, but
    # the cost is ~1/HW of the elementwise work so it is left as-is.

    # ---------------- Spatial attention ----------------
    avg_s = jnp.mean(s, axis=1)                             # (Bb, HW) channel mean
    max_s = jnp.max(s, axis=1)                              # (Bb, HW) channel max
    am = jnp.concatenate([avg_s, max_s], axis=0)            # (2*Bb, HW) stacked
    B2 = 2 * Bb

    # Boundary masks for the 7x7 "same" conv.  Row mask needs no division: for
    # a row-major flatten, (h >= k) <=> (lane >= k*W).
    lane = lax.broadcasted_iota(jnp.int32, (B2, HW), 1)
    if (W & (W - 1)) == 0:                                  # power-of-two width
        wpos = jnp.bitwise_and(lane, W - 1)
    else:
        wpos = lane % W
    # Sublane selector: first Bb rows are the avg map, last Bb rows the max map.
    is_avg_row = lax.broadcasted_iota(jnp.int32, (B2, HW), 0) < Bb

    row_masks, col_masks = [], []
    for d in range(-PAD, PAD + 1):
        lo_r, hi_r = max(0, -d) * W, min(H, H - d) * W
        row_masks.append(jnp.logical_and(lane >= lo_r, lane < hi_r))
        lo_c, hi_c = max(0, -d), min(W, W - d)
        col_masks.append(jnp.logical_and(wpos >= lo_c, wpos < hi_c))

    # Each tap = ONE XLU lane-roll of the stacked map + masked FMA on the VPU.
    # Row-boundary select is applied once per ki; two alternating accumulators
    # keep the dependent-add chains short.
    accs = [jnp.zeros((B2, HW), jnp.float32), jnp.zeros((B2, HW), jnp.float32)]
    for ki in range(KSIZE):
        di = ki - PAD
        part = jnp.zeros((B2, HW), jnp.float32)
        for kj in range(KSIZE):
            dj = kj - PAD
            off = di * W + dj
            if off == 0:
                am_sh = am
            else:
                am_sh = pltpu.roll(am, (-off) % HW, 1)      # shifted[p] = src[p + off]
            wa = wc_ref[ki * KSIZE + kj]                    # avg-channel tap
            wm = wc_ref[KSIZE * KSIZE + ki * KSIZE + kj]    # max-channel tap
            wfull = jnp.where(is_avg_row, wa, wm)           # per-row tap weight
            part = part + jnp.where(col_masks[kj], wfull * am_sh, 0.0)
        accs[ki & 1] = accs[ki & 1] + jnp.where(row_masks[ki], part, 0.0)
    conv2 = accs[0] + accs[1]                               # (2Bb, HW)
    conv = conv2[:Bb] + conv2[Bb:]                          # avg-part + max-part
    sa = jax.nn.sigmoid(conv) * conv                        # (Bb, HW)

    # ---------------- Combine ----------------
    # sig*x + sig*y == sigmoid(ca_gate*s + sa) * s
    att = ca_gate[:, :, None] * s + sa[:, None, :]
    o_ref[...] = (jax.nn.sigmoid(att) * s).astype(o_ref.dtype)


def _tpu_vmem_capacity_bytes():
    """Best-effort query of per-TensorCore VMEM capacity; conservative fallback."""
    try:
        cap = int(pltpu.get_tpu_info().vmem_capacity_bytes)
        if cap > 0:
            return cap
    except Exception:
        pass
    return 64 * _MIB        # conservative (v7x-style per-TC VMEM)


def _vmem_plan(B, C, HW, itemsize):
    """Pick (Bb, vmem_limit_bytes) from the device VMEM capacity.

    Budget: x/y/out double-buffered pipeline blocks + ~8 f32 (C,HW) temporaries
    per batch element, targeting ~65% of the scoped VMEM limit.
    """
    cap = _tpu_vmem_capacity_bytes()
    if cap >= 96 * _MIB:
        # v5e / v6e: 128 MiB VMEM, single TensorCore -> one big block, no split.
        vmem_limit = 100 * _MIB
        multi_core = False
    else:
        # v7x-like: 64 MiB per TC, 2 TCs.  Leave >= 16 MiB headroom for Mosaic
        # internal scratch / spills / semaphores.
        vmem_limit = int(min(max(cap - 16 * _MIB, 32 * _MIB), 48 * _MIB))
        multi_core = True

    per_b = C * HW * (6 * itemsize + 8 * 4)    # 3 arrays x 2 bufs + 8 f32 temps
    budget = int(0.65 * vmem_limit)
    bb = max(1, min(B, budget // max(per_b, 1)))
    # TODO(synk): when bb == 1 and a single (C, HW) slab + temporaries exceed the
    # budget (huge feature maps on v7x), fall back to a two-pass streaming kernel
    # (pass 1: pools/spatial maps, pass 2: apply gates).

    # Megacore split only pays when each shard still streams >= ~4 MiB of input.
    if multi_core and B >= 2:
        half = max(1, B // 2)
        if min(bb, half) * C * HW * itemsize >= 4 * _MIB:
            bb = min(bb, half)

    while B % bb != 0:
        bb -= 1
    return bb, vmem_limit


def attention_forward(x, y, w1, w2, w_conv):
    B, C, H, W = x.shape
    Cr = w1.shape[0]
    HW = H * W
    # Perf note: H*W should ideally be a multiple of 128 for unmasked lane-dense
    # stores; correctness does not require it, but every block must cover the
    # full (C, HW) extent (do NOT tile C or HW — the roll+mask conv relies on it).

    # Lane-dense layout: flatten spatial dims onto the lane axis (free reshape).
    xf = x.reshape(B, C, HW)
    yf = y.reshape(B, C, HW)
    w1t = jnp.transpose(w1).astype(jnp.float32)             # (C, Cr)
    w2t = jnp.transpose(w2).astype(jnp.float32)             # (Cr, C)
    wc_flat = w_conv.reshape(-1).astype(jnp.float32)        # (2*49,) SMEM scalars

    itemsize = jnp.dtype(x.dtype).itemsize
    Bb, vmem_limit = _vmem_plan(B, C, HW, itemsize)

    grid_spec = pltpu.PrefetchScalarGridSpec(
        num_scalar_prefetch=0,
        grid=(B // Bb,),
        in_specs=[
            pl.BlockSpec((Bb, C, HW), lambda b: (b, 0, 0)),
            pl.BlockSpec((Bb, C, HW), lambda b: (b, 0, 0)),
            pl.BlockSpec((C, Cr), lambda b: (0, 0)),
            pl.BlockSpec((Cr, C), lambda b: (0, 0)),
            pl.BlockSpec(memory_space=pltpu.MemorySpace.SMEM),
        ],
        out_specs=pl.BlockSpec((Bb, C, HW), lambda b: (b, 0, 0)),
    )
    kernel = functools.partial(_attention_kernel, H=H, W=W)
    out = pl.pallas_call(
        kernel,
        out_shape=jax.ShapeDtypeStruct((B, C, HW), x.dtype),
        grid_spec=grid_spec,
        compiler_params=pltpu.CompilerParams(
            dimension_semantics=("parallel",),
            vmem_limit_bytes=int(vmem_limit),
        ),
    )(xf, yf, w1t, w2t, wc_flat)
    return out.reshape(B, C, H, W)


def attention_reference(x, y, w1, w2, w_conv):
    """Pure-JAX reference mirroring the PyTorch forward."""
    s = x + y
    avg_c = jnp.mean(s, axis=(2, 3), keepdims=True)
    max_c = jnp.max(s, axis=(2, 3), keepdims=True)

    def mlp(p):  # 1x1 convs on (B, C, 1, 1)
        h = jnp.maximum(jnp.einsum('rc,bcij->brij', w1, p), 0.0)
        return jnp.einsum('cr,brij->bcij', w2, h)

    ca = jax.nn.sigmoid(mlp(avg_c) + mlp(max_c)) * s
    avg_s = jnp.mean(s, axis=1, keepdims=True)
    max_s = jnp.max(s, axis=1, keepdims=True)
    cat = jnp.concatenate([avg_s, max_s], axis=1)               # (B, 2, H, W)
    conv = lax.conv_general_dilated(
        cat, w_conv[None], window_strides=(1, 1),
        padding=[(PAD, PAD), (PAD, PAD)],
        dimension_numbers=('NCHW', 'OIHW', 'NCHW'))
    sa = jax.nn.sigmoid(conv) * conv
    sig = jax.nn.sigmoid(ca + sa)
    return sig * x + sig * y


if __name__ == "__main__":
    B, C, H, W = 2, 32, 16, 16        # in_planes must be >= 16 (fc1 uses C // 16)
    Cr = C // 16

    key = jax.random.PRNGKey(0)
    kx, ky, k1, k2, kc = jax.random.split(key, 5)
    x = jax.random.normal(kx, (B, C, H, W), jnp.float32)
    y = jax.random.normal(ky, (B, C, H, W), jnp.float32)
    # Deterministic synthetic parameters (shapes from the module __init__).
    w1 = jax.random.normal(k1, (Cr, C), jnp.float32) * (1.0 / np.sqrt(C))        # fc1 (Cr, C, 1, 1)
    w2 = jax.random.normal(k2, (C, Cr), jnp.float32) * (1.0 / np.sqrt(Cr))       # fc2 (C, Cr, 1, 1)
    w_conv = jax.random.normal(kc, (2, KSIZE, KSIZE), jnp.float32) * (1.0 / 7.0)  # conv1 (1,2,7,7)

    out = attention_forward(x, y, w1, w2, w_conv)
    out = jax.block_until_ready(out)

    ref = attention_reference(x, y, w1, w2, w_conv)
    np.testing.assert_allclose(np.asarray(out), np.asarray(ref), atol=1e-4, rtol=1e-4)
    print("KERNEL_OK")
</pallas_src>

<mosaic_0001>
module attributes {stable_mosaic.version = 11 : i64} {
  func.func @_attention_kernel(%arg0: i32, %arg1: memref<2x32x256xf32, #tpu.memory_space<vmem>>, %arg2: memref<2x32x256xf32, #tpu.memory_space<vmem>>, %arg3: memref<32x2xf32, #tpu.memory_space<vmem>>, %arg4: memref<2x32xf32, #tpu.memory_space<vmem>>, %arg5: memref<98xf32, #tpu.memory_space<smem>>, %arg6: memref<2x32x256xf32, #tpu.memory_space<vmem>>) attributes {dimension_semantics = [#tpu.dimension_semantics<parallel>], iteration_bounds = array<i64: 1>, scalar_prefetch = 0 : i64, scratch_operands = 0 : i64, tpu.core_type = #tpu.core_type<tc>, window_params = [{transform_indices = @transform_0, window_bounds = array<i64: 2, 32, 256>}, {transform_indices = @transform_1, window_bounds = array<i64: 2, 32, 256>}, {pipeline_mode = #tpu.pipeline_mode<synchronous>, transform_indices = @transform_2, window_bounds = array<i64: 32, 2>}, {pipeline_mode = #tpu.pipeline_mode<synchronous>, transform_indices = @transform_3, window_bounds = array<i64: 2, 32>}, {transform_indices = @transform_4, window_bounds = array<i64: 98>}, {transform_indices = @transform_5, window_bounds = array<i64: 2, 32, 256>}]} {
    %c0 = arith.constant 0 : index
    %c0_0 = arith.constant 0 : index
    %c0_1 = arith.constant 0 : index
    %0 = vector.load %arg1[%c0, %c0_0, %c0_1] : memref<2x32x256xf32, #tpu.memory_space<vmem>>, vector<2x32x256xf32>
    %c0_2 = arith.constant 0 : index
    %c0_3 = arith.constant 0 : index
    %c0_4 = arith.constant 0 : index
    %1 = vector.load %arg2[%c0_2, %c0_3, %c0_4] : memref<2x32x256xf32, #tpu.memory_space<vmem>>, vector<2x32x256xf32>
    %2 = arith.addf %0, %1 : vector<2x32x256xf32>
    %cst = arith.constant dense<0.000000e+00> : vector<2x32xf32>
    %3 = vector.multi_reduction <add>, %2, %cst [2] : vector<2x32x256xf32> to vector<2x32xf32>
    %cst_5 = arith.constant 2.560000e+02 : f32
    %4 = vector.broadcast %cst_5 : f32 to vector<2x32xf32>
    %5 = arith.divf %3, %4 : vector<2x32xf32>
    %cst_6 = arith.constant dense<0xFF800000> : vector<2x32xf32>
    %6 = vector.multi_reduction <maximumf>, %2, %cst_6 [2] : vector<2x32x256xf32> to vector<2x32xf32>
    %7 = tpu.concatenate %5, %6 in 0 : vector<2x32xf32>, vector<2x32xf32> -> vector<4x32xf32>
    %c0_7 = arith.constant 0 : index
    %c0_8 = arith.constant 0 : index
    %8 = vector.load %arg3[%c0_7, %c0_8] : memref<32x2xf32, #tpu.memory_space<vmem>>, vector<32x2xf32>
    %c0_9 = arith.constant 0 : index
    %c0_10 = arith.constant 0 : index
    %9 = vector.load %arg4[%c0_9, %c0_10] : memref<2x32xf32, #tpu.memory_space<vmem>>, vector<2x32xf32>
    %cst_11 = arith.constant dense<0.000000e+00> : vector<4x2xf32>
    %10 = tpu.matmul %7, %8, %cst_11 {dimension_numbers = #tpu.dot_dimension_numbers<[1], [0], [0], [1], [0, 0, 1, 1], [], []>} : vector<4x32xf32>, vector<32x2xf32>, vector<4x2xf32> -> vector<4x2xf32>
    %cst_12 = arith.constant 0.000000e+00 : f32
    %11 = vector.broadcast %cst_12 : f32 to vector<4x2xf32>
    %12 = arith.maximumf %10, %11 : vector<4x2xf32>
    %cst_13 = arith.constant dense<0.000000e+00> : vector<4x32xf32>
    %13 = tpu.matmul %12, %9, %cst_13 {dimension_numbers = #tpu.dot_dimension_numbers<[1], [0], [0], [1], [0, 0, 1, 1], [], []>} : vector<4x2xf32>, vector<2x32xf32>, vector<4x32xf32> -> vector<4x32xf32>
    %14 = vector.extract_strided_slice %13 {offsets = [0, 0], sizes = [2, 32], strides = [1, 1]} : vector<4x32xf32> to vector<2x32xf32>
    %15 = vector.extract_strided_slice %13 {offsets = [2, 0], sizes = [2, 32], strides = [1, 1]} : vector<4x32xf32> to vector<2x32xf32>
    %16 = arith.addf %14, %15 : vector<2x32xf32>
    %17 = arith.negf %16 : vector<2x32xf32>
    %18 = math.exp %17 : vector<2x32xf32>
    %cst_14 = arith.constant 1.000000e+00 : f32
    %19 = vector.broadcast %cst_14 : f32 to vector<2x32xf32>
    %20 = arith.addf %19, %18 : vector<2x32xf32>
    %21 = arith.divf %19, %20 : vector<2x32xf32>
    %cst_15 = arith.constant dense<0.000000e+00> : vector<2x256xf32>
    %22 = vector.multi_reduction <add>, %2, %cst_15 [1] : vector<2x32x256xf32> to vector<2x256xf32>
    %cst_16 = arith.constant 3.200000e+01 : f32
    %23 = vector.broadcast %cst_16 : f32 to vector<2x256xf32>
    %24 = arith.divf %22, %23 : vector<2x256xf32>
    %cst_17 = arith.constant dense<0xFF800000> : vector<2x256xf32>
    %25 = vector.multi_reduction <maximumf>, %2, %cst_17 [1] : vector<2x32x256xf32> to vector<2x256xf32>
    %26 = tpu.concatenate %24, %25 in 0 : vector<2x256xf32>, vector<2x256xf32> -> vector<4x256xf32>
    %27 = tpu.iota {dimensions = array<i32: 1>} : vector<4x256xi32>
    %c15_i32 = arith.constant 15 : i32
    %28 = vector.broadcast %c15_i32 : i32 to vector<4x256xi32>
    %29 = arith.andi %27, %28 : vector<4x256xi32>
    %30 = tpu.iota {dimensions = array<i32: 0>} : vector<4x256xi32>
    %c2_i32 = arith.constant 2 : i32
    %31 = vector.broadcast %c2_i32 : i32 to vector<4x256xi32>
    %32 = arith.cmpi slt, %30, %31 : vector<4x256xi32>
    %c48_i32 = arith.constant 48 : i32
    %33 = vector.broadcast %c48_i32 : i32 to vector<4x256xi32>
    %34 = arith.cmpi sge, %27, %33 : vector<4x256xi32>
    %c256_i32 = arith.constant 256 : i32
    %35 = vector.broadcast %c256_i32 : i32 to vector<4x256xi32>
    %36 = arith.cmpi slt, %27, %35 : vector<4x256xi32>
    %37 = arith.andi %34, %36 : vector<4x256xi1>
    %c3_i32 = arith.constant 3 : i32
    %38 = vector.broadcast %c3_i32 : i32 to vector<4x256xi32>
    %39 = arith.cmpi sge, %29, %38 : vector<4x256xi32>
    %c16_i32 = arith.constant 16 : i32
    %40 = vector.broadcast %c16_i32 : i32 to vector<4x256xi32>
    %41 = arith.cmpi slt, %29, %40 : vector<4x256xi32>
    %42 = arith.andi %39, %41 : vector<4x256xi1>
    %c32_i32 = arith.constant 32 : i32
    %43 = vector.broadcast %c32_i32 : i32 to vector<4x256xi32>
    %44 = arith.cmpi sge, %27, %43 : vector<4x256xi32>
    %c256_i32_18 = arith.constant 256 : i32
    %45 = vector.broadcast %c256_i32_18 : i32 to vector<4x256xi32>
    %46 = arith.cmpi slt, %27, %45 : vector<4x256xi32>
    %47 = arith.andi %44, %46 : vector<4x256xi1>
    %c2_i32_19 = arith.constant 2 : i32
    %48 = vector.broadcast %c2_i32_19 : i32 to vector<4x256xi32>
    %49 = arith.cmpi sge, %29, %48 : vector<4x256xi32>
    %c16_i32_20 = arith.constant 16 : i32
    %50 = vector.broadcast %c16_i32_20 : i32 to vector<4x256xi32>
    %51 = arith.cmpi slt, %29, %50 : vector<4x256xi32>
    %52 = arith.andi %49, %51 : vector<4x256xi1>
    %c16_i32_21 = arith.constant 16 : i32
    %53 = vector.broadcast %c16_i32_21 : i32 to vector<4x256xi32>
    %54 = arith.cmpi sge, %27, %53 : vector<4x256xi32>
    %c256_i32_22 = arith.constant 256 : i32
    %55 = vector.broadcast %c256_i32_22 : i32 to vector<4x256xi32>
    %56 = arith.cmpi slt, %27, %55 : vector<4x256xi32>
    %57 = arith.andi %54, %56 : vector<4x256xi1>
    %c1_i32 = arith.constant 1 : i32
    %58 = vector.broadcast %c1_i32 : i32 to vector<4x256xi32>
    %59 = arith.cmpi sge, %29, %58 : vector<4x256xi32>
    %c16_i32_23 = arith.constant 16 : i32
    %60 = vector.broadcast %c16_i32_23 : i32 to vector<4x256xi32>
    %61 = arith.cmpi slt, %29, %60 : vector<4x256xi32>
    %62 = arith.andi %59, %61 : vector<4x256xi1>
    %c0_i32 = arith.constant 0 : i32
    %63 = vector.broadcast %c0_i32 : i32 to vector<4x256xi32>
    %64 = arith.cmpi sge, %27, %63 : vector<4x256xi32>
    %c256_i32_24 = arith.constant 256 : i32
    %65 = vector.broadcast %c256_i32_24 : i32 to vector<4x256xi32>
    %66 = arith.cmpi slt, %27, %65 : vector<4x256xi32>
    %67 = arith.andi %64, %66 : vector<4x256xi1>
    %c0_i32_25 = arith.constant 0 : i32
    %68 = vector.broadcast %c0_i32_25 : i32 to vector<4x256xi32>
    %69 = arith.cmpi sge, %29, %68 : vector<4x256xi32>
    %c16_i32_26 = arith.constant 16 : i32
    %70 = vector.broadcast %c16_i32_26 : i32 to vector<4x256xi32>
    %71 = arith.cmpi slt, %29, %70 : vector<4x256xi32>
    %72 = arith.andi %69, %71 : vector<4x256xi1>
    %c0_i32_27 = arith.constant 0 : i32
    %73 = vector.broadcast %c0_i32_27 : i32 to vector<4x256xi32>
    %74 = arith.cmpi sge, %27, %73 : vector<4x256xi32>
    %c240_i32 = arith.constant 240 : i32
    %75 = vector.broadcast %c240_i32 : i32 to vector<4x256xi32>
    %76 = arith.cmpi slt, %27, %75 : vector<4x256xi32>
    %77 = arith.andi %74, %76 : vector<4x256xi1>
    %c0_i32_28 = arith.constant 0 : i32
    %78 = vector.broadcast %c0_i32_28 : i32 to vector<4x256xi32>
    %79 = arith.cmpi sge, %29, %78 : vector<4x256xi32>
    %c15_i32_29 = arith.constant 15 : i32
    %80 = vector.broadcast %c15_i32_29 : i32 to vector<4x256xi32>
    %81 = arith.cmpi slt, %29, %80 : vector<4x256xi32>
    %82 = arith.andi %79, %81 : vector<4x256xi1>
    %c0_i32_30 = arith.constant 0 : i32
    %83 = vector.broadcast %c0_i32_30 : i32 to vector<4x256xi32>
    %84 = arith.cmpi sge, %27, %83 : vector<4x256xi32>
    %c224_i32 = arith.constant 224 : i32
    %85 = vector.broadcast %c224_i32 : i32 to vector<4x256xi32>
    %86 = arith.cmpi slt, %27, %85 : vector<4x256xi32>
    %87 = arith.andi %84, %86 : vector<4x256xi1>
    %c0_i32_31 = arith.constant 0 : i32
    %88 = vector.broadcast %c0_i32_31 : i32 to vector<4x256xi32>
    %89 = arith.cmpi sge, %29, %88 : vector<4x256xi32>
    %c14_i32 = arith.constant 14 : i32
    %90 = vector.broadcast %c14_i32 : i32 to vector<4x256xi32>
    %91 = arith.cmpi slt, %29, %90 : vector<4x256xi32>
    %92 = arith.andi %89, %91 : vector<4x256xi1>
    %c0_i32_32 = arith.constant 0 : i32
    %93 = vector.broadcast %c0_i32_32 : i32 to vector<4x256xi32>
    %94 = arith.cmpi sge, %27, %93 : vector<4x256xi32>
    %c208_i32 = arith.constant 208 : i32
    %95 = vector.broadcast %c208_i32 : i32 to vector<4x256xi32>
    %96 = arith.cmpi slt, %27, %95 : vector<4x256xi32>
    %97 = arith.andi %94, %96 : vector<4x256xi1>
    %c0_i32_33 = arith.constant 0 : i32
    %98 = vector.broadcast %c0_i32_33 : i32 to vector<4x256xi32>
    %99 = arith.cmpi sge, %29, %98 : vector<4x256xi32>
    %c13_i32 = arith.constant 13 : i32
    %100 = vector.broadcast %c13_i32 : i32 to vector<4x256xi32>
    %101 = arith.cmpi slt, %29, %100 : vector<4x256xi32>
    %102 = arith.andi %99, %101 : vector<4x256xi1>
    %cst_34 = arith.constant 0.000000e+00 : f32
    %103 = vector.broadcast %cst_34 : f32 to vector<4x256xf32>
    %cst_35 = arith.constant 0.000000e+00 : f32
    %104 = vector.broadcast %cst_35 : f32 to vector<4x256xf32>
    %cst_36 = arith.constant 0.000000e+00 : f32
    %105 = vector.broadcast %cst_36 : f32 to vector<4x256xf32>
    %c51_i32 = arith.constant 51 : i32
    %106 = tpu.dynamic_rotate %26 by %c51_i32 dim 1 : vector<4x256xf32>, i32 -> vector<4x256xf32>
    %c0_37 = arith.constant 0 : index
    %107 = memref.load %arg5[%c0_37] : memref<98xf32, #tpu.memory_space<smem>>
    %c49 = arith.constant 49 : index
    %108 = memref.load %arg5[%c49] : memref<98xf32, #tpu.memory_space<smem>>
    %109 = vector.broadcast %107 : f32 to vector<4x256xf32>
    %110 = vector.broadcast %108 : f32 to vector<4x256xf32>
    %111 = arith.select %32, %109, %110 : vector<4x256xi1>, vector<4x256xf32>
    %112 = arith.mulf %111, %106 : vector<4x256xf32>
    %cst_38 = arith.constant 0.000000e+00 : f32
    %113 = vector.broadcast %cst_38 : f32 to vector<4x256xf32>
    %114 = arith.select %42, %112, %113 : vector<4x256xi1>, vector<4x256xf32>
    %115 = arith.addf %105, %114 : vector<4x256xf32>
    %c50_i32 = arith.constant 50 : i32
    %116 = tpu.dynamic_rotate %26 by %c50_i32 dim 1 : vector<4x256xf32>, i32 -> vector<4x256xf32>
    %c1 = arith.constant 1 : index
    %117 = memref.load %arg5[%c1] : memref<98xf32, #tpu.memory_space<smem>>
    %c50 = arith.constant 50 : index
    %118 = memref.load %arg5[%c50] : memref<98xf32, #tpu.memory_space<smem>>
    %119 = vector.broadcast %117 : f32 to vector<4x256xf32>
    %120 = vector.broadcast %118 : f32 to vector<4x256xf32>
    %121 = arith.select %32, %119, %120 : vector<4x256xi1>, vector<4x256xf32>
    %122 = arith.mulf %121, %116 : vector<4x256xf32>
    %cst_39 = arith.constant 0.000000e+00 : f32
    %123 = vector.broadcast %cst_39 : f32 to vector<4x256xf32>
    %124 = arith.select %52, %122, %123 : vector<4x256xi1>, vector<4x256xf32>
    %125 = arith.addf %115, %124 : vector<4x256xf32>
    %c49_i32 = arith.constant 49 : i32
    %126 = tpu.dynamic_rotate %26 by %c49_i32 dim 1 : vector<4x256xf32>, i32 -> vector<4x256xf32>
    %c2 = arith.constant 2 : index
    %127 = memref.load %arg5[%c2] : memref<98xf32, #tpu.memory_space<smem>>
    %c51 = arith.constant 51 : index
    %128 = memref.load %arg5[%c51] : memref<98xf32, #tpu.memory_space<smem>>
    %129 = vector.broadcast %127 : f32 to vector<4x256xf32>
    %130 = vector.broadcast %128 : f32 to vector<4x256xf32>
    %131 = arith.select %32, %129, %130 : vector<4x256xi1>, vector<4x256xf32>
    %132 = arith.mulf %131, %126 : vector<4x256xf32>
    %cst_40 = arith.constant 0.000000e+00 : f32
    %133 = vector.broadcast %cst_40 : f32 to vector<4x256xf32>
    %134 = arith.select %62, %132, %133 : vector<4x256xi1>, vector<4x256xf32>
    %135 = arith.addf %125, %134 : vector<4x256xf32>
    %c48_i32_41 = arith.constant 48 : i32
    %136 = tpu.dynamic_rotate %26 by %c48_i32_41 dim 1 : vector<4x256xf32>, i32 -> vector<4x256xf32>
    %c3 = arith.constant 3 : index
    %137 = memref.load %arg5[%c3] : memref<98xf32, #tpu.memory_space<smem>>
    %c52 = arith.constant 52 : index
    %138 = memref.load %arg5[%c52] : memref<98xf32, #tpu.memory_space<smem>>
    %139 = vector.broadcast %137 : f32 to vector<4x256xf32>
    %140 = vector.broadcast %138 : f32 to vector<4x256xf32>
    %141 = arith.select %32, %139, %140 : vector<4x256xi1>, vector<4x256xf32>
    %142 = arith.mulf %141, %136 : vector<4x256xf32>
    %cst_42 = arith.constant 0.000000e+00 : f32
    %143 = vector.broadcast %cst_42 : f32 to vector<4x256xf32>
    %144 = arith.select %72, %142, %143 : vector<4x256xi1>, vector<4x256xf32>
    %145 = arith.addf %135, %144 : vector<4x256xf32>
    %c47_i32 = arith.constant 47 : i32
    %146 = tpu.dynamic_rotate %26 by %c47_i32 dim 1 : vector<4x256xf32>, i32 -> vector<4x256xf32>
    %c4 = arith.constant 4 : index
    %147 = memref.load %arg5[%c4] : memref<98xf32, #tpu.memory_space<smem>>
    %c53 = arith.constant 53 : index
    %148 = memref.load %arg5[%c53] : memref<98xf32, #tpu.memory_space<smem>>
    %149 = vector.broadcast %147 : f32 to vector<4x256xf32>
    %150 = vector.broadcast %148 : f32 to vector<4x256xf32>
    %151 = arith.select %32, %149, %150 : vector<4x256xi1>, vector<4x256xf32>
    %152 = arith.mulf %151, %146 : vector<4x256xf32>
    %cst_43 = arith.constant 0.000000e+00 : f32
    %153 = vector.broadcast %cst_43 : f32 to vector<4x256xf32>
    %154 = arith.select %82, %152, %153 : vector<4x256xi1>, vector<4x256xf32>
    %155 = arith.addf %145, %154 : vector<4x256xf32>
    %c46_i32 = arith.constant 46 : i32
    %156 = tpu.dynamic_rotate %26 by %c46_i32 dim 1 : vector<4x256xf32>, i32 -> vector<4x256xf32>
    %c5 = arith.constant 5 : index
    %157 = memref.load %arg5[%c5] : memref<98xf32, #tpu.memory_space<smem>>
    %c54 = arith.constant 54 : index
    %158 = memref.load %arg5[%c54] : memref<98xf32, #tpu.memory_space<smem>>
    %159 = vector.broadcast %157 : f32 to vector<4x256xf32>
    %160 = vector.broadcast %158 : f32 to vector<4x256xf32>
    %161 = arith.select %32, %159, %160 : vector<4x256xi1>, vector<4x256xf32>
    %162 = arith.mulf %161, %156 : vector<4x256xf32>
    %cst_44 = arith.constant 0.000000e+00 : f32
    %163 = vector.broadcast %cst_44 : f32 to vector<4x256xf32>
    %164 = arith.select %92, %162, %163 : vector<4x256xi1>, vector<4x256xf32>
    %165 = arith.addf %155, %164 : vector<4x256xf32>
    %c45_i32 = arith.constant 45 : i32
    %166 = tpu.dynamic_rotate %26 by %c45_i32 dim 1 : vector<4x256xf32>, i32 -> vector<4x256xf32>
    %c6 = arith.constant 6 : index
    %167 = memref.load %arg5[%c6] : memref<98xf32, #tpu.memory_space<smem>>
    %c55 = arith.constant 55 : index
    %168 = memref.load %arg5[%c55] : memref<98xf32, #tpu.memory_space<smem>>
    %169 = vector.broadcast %167 : f32 to vector<4x256xf32>
    %170 = vector.broadcast %168 : f32 to vector<4x256xf32>
    %171 = arith.select %32, %169, %170 : vector<4x256xi1>, vector<4x256xf32>
    %172 = arith.mulf %171, %166 : vector<4x256xf32>
    %cst_45 = arith.constant 0.000000e+00 : f32
    %173 = vector.broadcast %cst_45 : f32 to vector<4x256xf32>
    %174 = arith.select %102, %172, %173 : vector<4x256xi1>, vector<4x256xf32>
    %175 = arith.addf %165, %174 : vector<4x256xf32>
    %cst_46 = arith.constant 0.000000e+00 : f32
    %176 = vector.broadcast %cst_46 : f32 to vector<4x256xf32>
    %177 = arith.select %37, %175, %176 : vector<4x256xi1>, vector<4x256xf32>
    %178 = arith.addf %103, %177 : vector<4x256xf32>
    %cst_47 = arith.constant 0.000000e+00 : f32
    %179 = vector.broadcast %cst_47 : f32 to vector<4x256xf32>
    %c35_i32 = arith.constant 35 : i32
    %180 = tpu.dynamic_rotate %26 by %c35_i32 dim 1 : vector<4x256xf32>, i32 -> vector<4x256xf32>
    %c7 = arith.constant 7 : index
    %181 = memref.load %arg5[%c7] : memref<98xf32, #tpu.memory_space<smem>>
    %c56 = arith.constant 56 : index
    %182 = memref.load %arg5[%c56] : memref<98xf32, #tpu.memory_space<smem>>
    %183 = vector.broadcast %181 : f32 to vector<4x256xf32>
    %184 = vector.broadcast %182 : f32 to vector<4x256xf32>
    %185 = arith.select %32, %183, %184 : vector<4x256xi1>, vector<4x256xf32>
    %186 = arith.mulf %185, %180 : vector<4x256xf32>
    %cst_48 = arith.constant 0.000000e+00 : f32
    %187 = vector.broadcast %cst_48 : f32 to vector<4x256xf32>
    %188 = arith.select %42, %186, %187 : vector<4x256xi1>, vector<4x256xf32>
    %189 = arith.addf %179, %188 : vector<4x256xf32>
    %c34_i32 = arith.constant 34 : i32
    %190 = tpu.dynamic_rotate %26 by %c34_i32 dim 1 : vector<4x256xf32>, i32 -> vector<4x256xf32>
    %c8 = arith.constant 8 : index
    %191 = memref.load %arg5[%c8] : memref<98xf32, #tpu.memory_space<smem>>
    %c57 = arith.constant 57 : index
    %192 = memref.load %arg5[%c57] : memref<98xf32, #tpu.memory_space<smem>>
    %193 = vector.broadcast %191 : f32 to vector<4x256xf32>
    %194 = vector.broadcast %192 : f32 to vector<4x256xf32>
    %195 = arith.select %32, %193, %194 : vector<4x256xi1>, vector<4x256xf32>
    %196 = arith.mulf %195, %190 : vector<4x256xf32>
    %cst_49 = arith.constant 0.000000e+00 : f32
    %197 = vector.broadcast %cst_49 : f32 to vector<4x256xf32>
    %198 = arith.select %52, %196, %197 : vector<4x256xi1>, vector<4x256xf32>
    %199 = arith.addf %189, %198 : vector<4x256xf32>
    %c33_i32 = arith.constant 33 : i32
    %200 = tpu.dynamic_rotate %26 by %c33_i32 dim 1 : vector<4x256xf32>, i32 -> vector<4x256xf32>
    %c9 = arith.constant 9 : index
    %201 = memref.load %arg5[%c9] : memref<98xf32, #tpu.memory_space<smem>>
    %c58 = arith.constant 58 : index
    %202 = memref.load %arg5[%c58] : memref<98xf32, #tpu.memory_space<smem>>
    %203 = vector.broadcast %201 : f32 to vector<4x256xf32>
    %204 = vector.broadcast %202 : f32 to vector<4x256xf32>
    %205 = arith.select %32, %203, %204 : vector<4x256xi1>, vector<4x256xf32>
    %206 = arith.mulf %205, %200 : vector<4x256xf32>
    %cst_50 = arith.constant 0.000000e+00 : f32
    %207 = vector.broadcast %cst_50 : f32 to vector<4x256xf32>
    %208 = arith.select %62, %206, %207 : vector<4x256xi1>, vector<4x256xf32>
    %209 = arith.addf %199, %208 : vector<4x256xf32>
    %c32_i32_51 = arith.constant 32 : i32
    %210 = tpu.dynamic_rotate %26 by %c32_i32_51 dim 1 : vector<4x256xf32>, i32 -> vector<4x256xf32>
    %c10 = arith.constant 10 : index
    %211 = memref.load %arg5[%c10] : memref<98xf32, #tpu.memory_space<smem>>
    %c59 = arith.constant 59 : index
    %212 = memref.load %arg5[%c59] : memref<98xf32, #tpu.memory_space<smem>>
    %213 = vector.broadcast %211 : f32 to vector<4x256xf32>
    %214 = vector.broadcast %212 : f32 to vector<4x256xf32>
    %215 = arith.select %32, %213, %214 : vector<4x256xi1>, vector<4x256xf32>
    %216 = arith.mulf %215, %210 : vector<4x256xf32>
    %cst_52 = arith.constant 0.000000e+00 : f32
    %217 = vector.broadcast %cst_52 : f32 to vector<4x256xf32>
    %218 = arith.select %72, %216, %217 : vector<4x256xi1>, vector<4x256xf32>
    %219 = arith.addf %209, %218 : vector<4x256xf32>
    %c31_i32 = arith.constant 31 : i32
    %220 = tpu.dynamic_rotate %26 by %c31_i32 dim 1 : vector<4x256xf32>, i32 -> vector<4x256xf32>
    %c11 = arith.constant 11 : index
    %221 = memref.load %arg5[%c11] : memref<98xf32, #tpu.memory_space<smem>>
    %c60 = arith.constant 60 : index
    %222 = memref.load %arg5[%c60] : memref<98xf32, #tpu.memory_space<smem>>
    %223 = vector.broadcast %221 : f32 to vector<4x256xf32>
    %224 = vector.broadcast %222 : f32 to vector<4x256xf32>
    %225 = arith.select %32, %223, %224 : vector<4x256xi1>, vector<4x256xf32>
    %226 = arith.mulf %225, %220 : vector<4x256xf32>
    %cst_53 = arith.constant 0.000000e+00 : f32
    %227 = vector.broadcast %cst_53 : f32 to vector<4x256xf32>
    %228 = arith.select %82, %226, %227 : vector<4x256xi1>, vector<4x256xf32>
    %229 = arith.addf %219, %228 : vector<4x256xf32>
    %c30_i32 = arith.constant 30 : i32
    %230 = tpu.dynamic_rotate %26 by %c30_i32 dim 1 : vector<4x256xf32>, i32 -> vector<4x256xf32>
    %c12 = arith.constant 12 : index
    %231 = memref.load %arg5[%c12] : memref<98xf32, #tpu.memory_space<smem>>
    %c61 = arith.constant 61 : index
    %232 = memref.load %arg5[%c61] : memref<98xf32, #tpu.memory_space<smem>>
    %233 = vector.broadcast %231 : f32 to vector<4x256xf32>
    %234 = vector.broadcast %232 : f32 to vector<4x256xf32>
    %235 = arith.select %32, %233, %234 : vector<4x256xi1>, vector<4x256xf32>
    %236 = arith.mulf %235, %230 : vector<4x256xf32>
    %cst_54 = arith.constant 0.000000e+00 : f32
    %237 = vector.broadcast %cst_54 : f32 to vector<4x256xf32>
    %238 = arith.select %92, %236, %237 : vector<4x256xi1>, vector<4x256xf32>
    %239 = arith.addf %229, %238 : vector<4x256xf32>
    %c29_i32 = arith.constant 29 : i32
    %240 = tpu.dynamic_rotate %26 by %c29_i32 dim 1 : vector<4x256xf32>, i32 -> vector<4x256xf32>
    %c13 = arith.constant 13 : index
    %241 = memref.load %arg5[%c13] : memref<98xf32, #tpu.memory_space<smem>>
    %c62 = arith.constant 62 : index
    %242 = memref.load %arg5[%c62] : memref<98xf32, #tpu.memory_space<smem>>
    %243 = vector.broadcast %241 : f32 to vector<4x256xf32>
    %244 = vector.broadcast %242 : f32 to vector<4x256xf32>
    %245 = arith.select %32, %243, %244 : vector<4x256xi1>, vector<4x256xf32>
    %246 = arith.mulf %245, %240 : vector<4x256xf32>
    %cst_55 = arith.constant 0.000000e+00 : f32
    %247 = vector.broadcast %cst_55 : f32 to vector<4x256xf32>
    %248 = arith.select %102, %246, %247 : vector<4x256xi1>, vector<4x256xf32>
    %249 = arith.addf %239, %248 : vector<4x256xf32>
    %cst_56 = arith.constant 0.000000e+00 : f32
    %250 = vector.broadcast %cst_56 : f32 to vector<4x256xf32>
    %251 = arith.select %47, %249, %250 : vector<4x256xi1>, vector<4x256xf32>
    %252 = arith.addf %104, %251 : vector<4x256xf32>
    %cst_57 = arith.constant 0.000000e+00 : f32
    %253 = vector.broadcast %cst_57 : f32 to vector<4x256xf32>
    %c19_i32 = arith.constant 19 : i32
    %254 = tpu.dynamic_rotate %26 by %c19_i32 dim 1 : vector<4x256xf32>, i32 -> vector<4x256xf32>
    %c14 = arith.constant 14 : index
    %255 = memref.load %arg5[%c14] : memref<98xf32, #tpu.memory_space<smem>>
    %c63 = arith.constant 63 : index
    %256 = memref.load %arg5[%c63] : memref<98xf32, #tpu.memory_space<smem>>
    %257 = vector.broadcast %255 : f32 to vector<4x256xf32>
    %258 = vector.broadcast %256 : f32 to vector<4x256xf32>
    %259 = arith.select %32, %257, %258 : vector<4x256xi1>, vector<4x256xf32>
    %260 = arith.mulf %259, %254 : vector<4x256xf32>
    %cst_58 = arith.constant 0.000000e+00 : f32
    %261 = vector.broadcast %cst_58 : f32 to vector<4x256xf32>
    %262 = arith.select %42, %260, %261 : vector<4x256xi1>, vector<4x256xf32>
    %263 = arith.addf %253, %262 : vector<4x256xf32>
    %c18_i32 = arith.constant 18 : i32
    %264 = tpu.dynamic_rotate %26 by %c18_i32 dim 1 : vector<4x256xf32>, i32 -> vector<4x256xf32>
    %c15 = arith.constant 15 : index
    %265 = memref.load %arg5[%c15] : memref<98xf32, #tpu.memory_space<smem>>
    %c64 = arith.constant 64 : index
    %266 = memref.load %arg5[%c64] : memref<98xf32, #tpu.memory_space<smem>>
    %267 = vector.broadcast %265 : f32 to vector<4x256xf32>
    %268 = vector.broadcast %266 : f32 to vector<4x256xf32>
    %269 = arith.select %32, %267, %268 : vector<4x256xi1>, vector<4x256xf32>
    %270 = arith.mulf %269, %264 : vector<4x256xf32>
    %cst_59 = arith.constant 0.000000e+00 : f32
    %271 = vector.broadcast %cst_59 : f32 to vector<4x256xf32>
    %272 = arith.select %52, %270, %271 : vector<4x256xi1>, vector<4x256xf32>
    %273 = arith.addf %263, %272 : vector<4x256xf32>
    %c17_i32 = arith.constant 17 : i32
    %274 = tpu.dynamic_rotate %26 by %c17_i32 dim 1 : vector<4x256xf32>, i32 -> vector<4x256xf32>
    %c16 = arith.constant 16 : index
    %275 = memref.load %arg5[%c16] : memref<98xf32, #tpu.memory_space<smem>>
    %c65 = arith.constant 65 : index
    %276 = memref.load %arg5[%c65] : memref<98xf32, #tpu.memory_space<smem>>
    %277 = vector.broadcast %275 : f32 to vector<4x256xf32>
    %278 = vector.broadcast %276 : f32 to vector<4x256xf32>
    %279 = arith.select %32, %277, %278 : vector<4x256xi1>, vector<4x256xf32>
    %280 = arith.mulf %279, %274 : vector<4x256xf32>
    %cst_60 = arith.constant 0.000000e+00 : f32
    %281 = vector.broadcast %cst_60 : f32 to vector<4x256xf32>
    %282 = arith.select %62, %280, %281 : vector<4x256xi1>, vector<4x256xf32>
    %283 = arith.addf %273, %282 : vector<4x256xf32>
    %c16_i32_61 = arith.constant 16 : i32
    %284 = tpu.dynamic_rotate %26 by %c16_i32_61 dim 1 : vector<4x256xf32>, i32 -> vector<4x256xf32>
    %c17 = arith.constant 17 : index
    %285 = memref.load %arg5[%c17] : memref<98xf32, #tpu.memory_space<smem>>
    %c66 = arith.constant 66 : index
    %286 = memref.load %arg5[%c66] : memref<98xf32, #tpu.memory_space<smem>>
    %287 = vector.broadcast %285 : f32 to vector<4x256xf32>
    %288 = vector.broadcast %286 : f32 to vector<4x256xf32>
    %289 = arith.select %32, %287, %288 : vector<4x256xi1>, vector<4x256xf32>
    %290 = arith.mulf %289, %284 : vector<4x256xf32>
    %cst_62 = arith.constant 0.000000e+00 : f32
    %291 = vector.broadcast %cst_62 : f32 to vector<4x256xf32>
    %292 = arith.select %72, %290, %291 : vector<4x256xi1>, vector<4x256xf32>
    %293 = arith.addf %283, %292 : vector<4x256xf32>
    %c15_i32_63 = arith.constant 15 : i32
    %294 = tpu.dynamic_rotate %26 by %c15_i32_63 dim 1 : vector<4x256xf32>, i32 -> vector<4x256xf32>
    %c18 = arith.constant 18 : index
    %295 = memref.load %arg5[%c18] : memref<98xf32, #tpu.memory_space<smem>>
    %c67 = arith.constant 67 : index
    %296 = memref.load %arg5[%c67] : memref<98xf32, #tpu.memory_space<smem>>
    %297 = vector.broadcast %295 : f32 to vector<4x256xf32>
    %298 = vector.broadcast %296 : f32 to vector<4x256xf32>
    %299 = arith.select %32, %297, %298 : vector<4x256xi1>, vector<4x256xf32>
    %300 = arith.mulf %299, %294 : vector<4x256xf32>
    %cst_64 = arith.constant 0.000000e+00 : f32
    %301 = vector.broadcast %cst_64 : f32 to vector<4x256xf32>
    %302 = arith.select %82, %300, %301 : vector<4x256xi1>, vector<4x256xf32>
    %303 = arith.addf %293, %302 : vector<4x256xf32>
    %c14_i32_65 = arith.constant 14 : i32
    %304 = tpu.dynamic_rotate %26 by %c14_i32_65 dim 1 : vector<4x256xf32>, i32 -> vector<4x256xf32>
    %c19 = arith.constant 19 : index
    %305 = memref.load %arg5[%c19] : memref<98xf32, #tpu.memory_space<smem>>
    %c68 = arith.constant 68 : index
    %306 = memref.load %arg5[%c68] : memref<98xf32, #tpu.memory_space<smem>>
    %307 = vector.broadcast %305 : f32 to vector<4x256xf32>
    %308 = vector.broadcast %306 : f32 to vector<4x256xf32>
    %309 = arith.select %32, %307, %308 : vector<4x256xi1>, vector<4x256xf32>
    %310 = arith.mulf %309, %304 : vector<4x256xf32>
    %cst_66 = arith.constant 0.000000e+00 : f32
    %311 = vector.broadcast %cst_66 : f32 to vector<4x256xf32>
    %312 = arith.select %92, %310, %311 : vector<4x256xi1>, vector<4x256xf32>
    %313 = arith.addf %303, %312 : vector<4x256xf32>
    %c13_i32_67 = arith.constant 13 : i32
    %314 = tpu.dynamic_rotate %26 by %c13_i32_67 dim 1 : vector<4x256xf32>, i32 -> vector<4x256xf32>
    %c20 = arith.constant 20 : index
    %315 = memref.load %arg5[%c20] : memref<98xf32, #tpu.memory_space<smem>>
    %c69 = arith.constant 69 : index
    %316 = memref.load %arg5[%c69] : memref<98xf32, #tpu.memory_space<smem>>
    %317 = vector.broadcast %315 : f32 to vector<4x256xf32>
    %318 = vector.broadcast %316 : f32 to vector<4x256xf32>
    %319 = arith.select %32, %317, %318 : vector<4x256xi1>, vector<4x256xf32>
    %320 = arith.mulf %319, %314 : vector<4x256xf32>
    %cst_68 = arith.constant 0.000000e+00 : f32
    %321 = vector.broadcast %cst_68 : f32 to vector<4x256xf32>
    %322 = arith.select %102, %320, %321 : vector<4x256xi1>, vector<4x256xf32>
    %323 = arith.addf %313, %322 : vector<4x256xf32>
    %cst_69 = arith.constant 0.000000e+00 : f32
    %324 = vector.broadcast %cst_69 : f32 to vector<4x256xf32>
    %325 = arith.select %57, %323, %324 : vector<4x256xi1>, vector<4x256xf32>
    %326 = arith.addf %178, %325 : vector<4x256xf32>
    %cst_70 = arith.constant 0.000000e+00 : f32
    %327 = vector.broadcast %cst_70 : f32 to vector<4x256xf32>
    %c3_i32_71 = arith.constant 3 : i32
    %328 = tpu.dynamic_rotate %26 by %c3_i32_71 dim 1 : vector<4x256xf32>, i32 -> vector<4x256xf32>
    %c21 = arith.constant 21 : index
    %329 = memref.load %arg5[%c21] : memref<98xf32, #tpu.memory_space<smem>>
    %c70 = arith.constant 70 : index
    %330 = memref.load %arg5[%c70] : memref<98xf32, #tpu.memory_space<smem>>
    %331 = vector.broadcast %329 : f32 to vector<4x256xf32>
    %332 = vector.broadcast %330 : f32 to vector<4x256xf32>
    %333 = arith.select %32, %331, %332 : vector<4x256xi1>, vector<4x256xf32>
    %334 = arith.mulf %333, %328 : vector<4x256xf32>
    %cst_72 = arith.constant 0.000000e+00 : f32
    %335 = vector.broadcast %cst_72 : f32 to vector<4x256xf32>
    %336 = arith.select %42, %334, %335 : vector<4x256xi1>, vector<4x256xf32>
    %337 = arith.addf %327, %336 : vector<4x256xf32>
    %c2_i32_73 = arith.constant 2 : i32
    %338 = tpu.dynamic_rotate %26 by %c2_i32_73 dim 1 : vector<4x256xf32>, i32 -> vector<4x256xf32>
    %c22 = arith.constant 22 : index
    %339 = memref.load %arg5[%c22] : memref<98xf32, #tpu.memory_space<smem>>
    %c71 = arith.constant 71 : index
    %340 = memref.load %arg5[%c71] : memref<98xf32, #tpu.memory_space<smem>>
    %341 = vector.broadcast %339 : f32 to vector<4x256xf32>
    %342 = vector.broadcast %340 : f32 to vector<4x256xf32>
    %343 = arith.select %32, %341, %342 : vector<4x256xi1>, vector<4x256xf32>
    %344 = arith.mulf %343, %338 : vector<4x256xf32>
    %cst_74 = arith.constant 0.000000e+00 : f32
    %345 = vector.broadcast %cst_74 : f32 to vector<4x256xf32>
    %346 = arith.select %52, %344, %345 : vector<4x256xi1>, vector<4x256xf32>
    %347 = arith.addf %337, %346 : vector<4x256xf32>
    %c1_i32_75 = arith.constant 1 : i32
    %348 = tpu.dynamic_rotate %26 by %c1_i32_75 dim 1 : vector<4x256xf32>, i32 -> vector<4x256xf32>
    %c23 = arith.constant 23 : index
    %349 = memref.load %arg5[%c23] : memref<98xf32, #tpu.memory_space<smem>>
    %c72 = arith.constant 72 : index
    %350 = memref.load %arg5[%c72] : memref<98xf32, #tpu.memory_space<smem>>
    %351 = vector.broadcast %349 : f32 to vector<4x256xf32>
    %352 = vector.broadcast %350 : f32 to vector<4x256xf32>
    %353 = arith.select %32, %351, %352 : vector<4x256xi1>, vector<4x256xf32>
    %354 = arith.mulf %353, %348 : vector<4x256xf32>
    %cst_76 = arith.constant 0.000000e+00 : f32
    %355 = vector.broadcast %cst_76 : f32 to vector<4x256xf32>
    %356 = arith.select %62, %354, %355 : vector<4x256xi1>, vector<4x256xf32>
    %357 = arith.addf %347, %356 : vector<4x256xf32>
    %c24 = arith.constant 24 : index
    %358 = memref.load %arg5[%c24] : memref<98xf32, #tpu.memory_space<smem>>
    %c73 = arith.constant 73 : index
    %359 = memref.load %arg5[%c73] : memref<98xf32, #tpu.memory_space<smem>>
    %360 = vector.broadcast %358 : f32 to vector<4x256xf32>
    %361 = vector.broadcast %359 : f32 to vector<4x256xf32>
    %362 = arith.select %32, %360, %361 : vector<4x256xi1>, vector<4x256xf32>
    %363 = arith.mulf %362, %26 : vector<4x256xf32>
    %cst_77 = arith.constant 0.000000e+00 : f32
    %364 = vector.broadcast %cst_77 : f32 to vector<4x256xf32>
    %365 = arith.select %72, %363, %364 : vector<4x256xi1>, vector<4x256xf32>
    %366 = arith.addf %357, %365 : vector<4x256xf32>
    %c255_i32 = arith.constant 255 : i32
    %367 = tpu.dynamic_rotate %26 by %c255_i32 dim 1 : vector<4x256xf32>, i32 -> vector<4x256xf32>
    %c25 = arith.constant 25 : index
    %368 = memref.load %arg5[%c25] : memref<98xf32, #tpu.memory_space<smem>>
    %c74 = arith.constant 74 : index
    %369 = memref.load %arg5[%c74] : memref<98xf32, #tpu.memory_space<smem>>
    %370 = vector.broadcast %368 : f32 to vector<4x256xf32>
    %371 = vector.broadcast %369 : f32 to vector<4x256xf32>
    %372 = arith.select %32, %370, %371 : vector<4x256xi1>, vector<4x256xf32>
    %373 = arith.mulf %372, %367 : vector<4x256xf32>
    %cst_78 = arith.constant 0.000000e+00 : f32
    %374 = vector.broadcast %cst_78 : f32 to vector<4x256xf32>
    %375 = arith.select %82, %373, %374 : vector<4x256xi1>, vector<4x256xf32>
    %376 = arith.addf %366, %375 : vector<4x256xf32>
    %c254_i32 = arith.constant 254 : i32
    %377 = tpu.dynamic_rotate %26 by %c254_i32 dim 1 : vector<4x256xf32>, i32 -> vector<4x256xf32>
    %c26 = arith.constant 26 : index
    %378 = memref.load %arg5[%c26] : memref<98xf32, #tpu.memory_space<smem>>
    %c75 = arith.constant 75 : index
    %379 = memref.load %arg5[%c75] : memref<98xf32, #tpu.memory_space<smem>>
    %380 = vector.broadcast %378 : f32 to vector<4x256xf32>
    %381 = vector.broadcast %379 : f32 to vector<4x256xf32>
    %382 = arith.select %32, %380, %381 : vector<4x256xi1>, vector<4x256xf32>
    %383 = arith.mulf %382, %377 : vector<4x256xf32>
    %cst_79 = arith.constant 0.000000e+00 : f32
    %384 = vector.broadcast %cst_79 : f32 to vector<4x256xf32>
    %385 = arith.select %92, %383, %384 : vector<4x256xi1>, vector<4x256xf32>
    %386 = arith.addf %376, %385 : vector<4x256xf32>
    %c253_i32 = arith.constant 253 : i32
    %387 = tpu.dynamic_rotate %26 by %c253_i32 dim 1 : vector<4x256xf32>, i32 -> vector<4x256xf32>
    %c27 = arith.constant 27 : index
    %388 = memref.load %arg5[%c27] : memref<98xf32, #tpu.memory_space<smem>>
    %c76 = arith.constant 76 : index
    %389 = memref.load %arg5[%c76] : memref<98xf32, #tpu.memory_space<smem>>
    %390 = vector.broadcast %388 : f32 to vector<4x256xf32>
    %391 = vector.broadcast %389 : f32 to vector<4x256xf32>
    %392 = arith.select %32, %390, %391 : vector<4x256xi1>, vector<4x256xf32>
    %393 = arith.mulf %392, %387 : vector<4x256xf32>
    %cst_80 = arith.constant 0.000000e+00 : f32
    %394 = vector.broadcast %cst_80 : f32 to vector<4x256xf32>
    %395 = arith.select %102, %393, %394 : vector<4x256xi1>, vector<4x256xf32>
    %396 = arith.addf %386, %395 : vector<4x256xf32>
    %cst_81 = arith.constant 0.000000e+00 : f32
    %397 = vector.broadcast %cst_81 : f32 to vector<4x256xf32>
    %398 = arith.select %67, %396, %397 : vector<4x256xi1>, vector<4x256xf32>
    %399 = arith.addf %252, %398 : vector<4x256xf32>
    %cst_82 = arith.constant 0.000000e+00 : f32
    %400 = vector.broadcast %cst_82 : f32 to vector<4x256xf32>
    %c243_i32 = arith.constant 243 : i32
    %401 = tpu.dynamic_rotate %26 by %c243_i32 dim 1 : vector<4x256xf32>, i32 -> vector<4x256xf32>
    %c28 = arith.constant 28 : index
    %402 = memref.load %arg5[%c28] : memref<98xf32, #tpu.memory_space<smem>>
    %c77 = arith.constant 77 : index
    %403 = memref.load %arg5[%c77] : memref<98xf32, #tpu.memory_space<smem>>
    %404 = vector.broadcast %402 : f32 to vector<4x256xf32>
    %405 = vector.broadcast %403 : f32 to vector<4x256xf32>
    %406 = arith.select %32, %404, %405 : vector<4x256xi1>, vector<4x256xf32>
    %407 = arith.mulf %406, %401 : vector<4x256xf32>
    %cst_83 = arith.constant 0.000000e+00 : f32
    %408 = vector.broadcast %cst_83 : f32 to vector<4x256xf32>
    %409 = arith.select %42, %407, %408 : vector<4x256xi1>, vector<4x256xf32>
    %410 = arith.addf %400, %409 : vector<4x256xf32>
    %c242_i32 = arith.constant 242 : i32
    %411 = tpu.dynamic_rotate %26 by %c242_i32 dim 1 : vector<4x256xf32>, i32 -> vector<4x256xf32>
    %c29 = arith.constant 29 : index
    %412 = memref.load %arg5[%c29] : memref<98xf32, #tpu.memory_space<smem>>
    %c78 = arith.constant 78 : index
    %413 = memref.load %arg5[%c78] : memref<98xf32, #tpu.memory_space<smem>>
    %414 = vector.broadcast %412 : f32 to vector<4x256xf32>
    %415 = vector.broadcast %413 : f32 to vector<4x256xf32>
    %416 = arith.select %32, %414, %415 : vector<4x256xi1>, vector<4x256xf32>
    %417 = arith.mulf %416, %411 : vector<4x256xf32>
    %cst_84 = arith.constant 0.000000e+00 : f32
    %418 = vector.broadcast %cst_84 : f32 to vector<4x256xf32>
    %419 = arith.select %52, %417, %418 : vector<4x256xi1>, vector<4x256xf32>
    %420 = arith.addf %410, %419 : vector<4x256xf32>
    %c241_i32 = arith.constant 241 : i32
    %421 = tpu.dynamic_rotate %26 by %c241_i32 dim 1 : vector<4x256xf32>, i32 -> vector<4x256xf32>
    %c30 = arith.constant 30 : index
    %422 = memref.load %arg5[%c30] : memref<98xf32, #tpu.memory_space<smem>>
    %c79 = arith.constant 79 : index
    %423 = memref.load %arg5[%c79] : memref<98xf32, #tpu.memory_space<smem>>
    %424 = vector.broadcast %422 : f32 to vector<4x256xf32>
    %425 = vector.broadcast %423 : f32 to vector<4x256xf32>
    %426 = arith.select %32, %424, %425 : vector<4x256xi1>, vector<4x256xf32>
    %427 = arith.mulf %426, %421 : vector<4x256xf32>
    %cst_85 = arith.constant 0.000000e+00 : f32
    %428 = vector.broadcast %cst_85 : f32 to vector<4x256xf32>
    %429 = arith.select %62, %427, %428 : vector<4x256xi1>, vector<4x256xf32>
    %430 = arith.addf %420, %429 : vector<4x256xf32>
    %c240_i32_86 = arith.constant 240 : i32
    %431 = tpu.dynamic_rotate %26 by %c240_i32_86 dim 1 : vector<4x256xf32>, i32 -> vector<4x256xf32>
    %c31 = arith.constant 31 : index
    %432 = memref.load %arg5[%c31] : memref<98xf32, #tpu.memory_space<smem>>
    %c80 = arith.constant 80 : index
    %433 = memref.load %arg5[%c80] : memref<98xf32, #tpu.memory_space<smem>>
    %434 = vector.broadcast %432 : f32 to vector<4x256xf32>
    %435 = vector.broadcast %433 : f32 to vector<4x256xf32>
    %436 = arith.select %32, %434, %435 : vector<4x256xi1>, vector<4x256xf32>
    %437 = arith.mulf %436, %431 : vector<4x256xf32>
    %cst_87 = arith.constant 0.000000e+00 : f32
    %438 = vector.broadcast %cst_87 : f32 to vector<4x256xf32>
    %439 = arith.select %72, %437, %438 : vector<4x256xi1>, vector<4x256xf32>
    %440 = arith.addf %430, %439 : vector<4x256xf32>
    %c239_i32 = arith.constant 239 : i32
    %441 = tpu.dynamic_rotate %26 by %c239_i32 dim 1 : vector<4x256xf32>, i32 -> vector<4x256xf32>
    %c32 = arith.constant 32 : index
    %442 = memref.load %arg5[%c32] : memref<98xf32, #tpu.memory_space<smem>>
    %c81 = arith.constant 81 : index
    %443 = memref.load %arg5[%c81] : memref<98xf32, #tpu.memory_space<smem>>
    %444 = vector.broadcast %442 : f32 to vector<4x256xf32>
    %445 = vector.broadcast %443 : f32 to vector<4x256xf32>
    %446 = arith.select %32, %444, %445 : vector<4x256xi1>, vector<4x256xf32>
    %447 = arith.mulf %446, %441 : vector<4x256xf32>
    %cst_88 = arith.constant 0.000000e+00 : f32
    %448 = vector.broadcast %cst_88 : f32 to vector<4x256xf32>
    %449 = arith.select %82, %447, %448 : vector<4x256xi1>, vector<4x256xf32>
    %450 = arith.addf %440, %449 : vector<4x256xf32>
    %c238_i32 = arith.constant 238 : i32
    %451 = tpu.dynamic_rotate %26 by %c238_i32 dim 1 : vector<4x256xf32>, i32 -> vector<4x256xf32>
    %c33 = arith.constant 33 : index
    %452 = memref.load %arg5[%c33] : memref<98xf32, #tpu.memory_space<smem>>
    %c82 = arith.constant 82 : index
    %453 = memref.load %arg5[%c82] : memref<98xf32, #tpu.memory_space<smem>>
    %454 = vector.broadcast %452 : f32 to vector<4x256xf32>
    %455 = vector.broadcast %453 : f32 to vector<4x256xf32>
    %456 = arith.select %32, %454, %455 : vector<4x256xi1>, vector<4x256xf32>
    %457 = arith.mulf %456, %451 : vector<4x256xf32>
    %cst_89 = arith.constant 0.000000e+00 : f32
    %458 = vector.broadcast %cst_89 : f32 to vector<4x256xf32>
    %459 = arith.select %92, %457, %458 : vector<4x256xi1>, vector<4x256xf32>
    %460 = arith.addf %450, %459 : vector<4x256xf32>
    %c237_i32 = arith.constant 237 : i32
    %461 = tpu.dynamic_rotate %26 by %c237_i32 dim 1 : vector<4x256xf32>, i32 -> vector<4x256xf32>
    %c34 = arith.constant 34 : index
    %462 = memref.load %arg5[%c34] : memref<98xf32, #tpu.memory_space<smem>>
    %c83 = arith.constant 83 : index
    %463 = memref.load %arg5[%c83] : memref<98xf32, #tpu.memory_space<smem>>
    %464 = vector.broadcast %462 : f32 to vector<4x256xf32>
    %465 = vector.broadcast %463 : f32 to vector<4x256xf32>
    %466 = arith.select %32, %464, %465 : vector<4x256xi1>, vector<4x256xf32>
    %467 = arith.mulf %466, %461 : vector<4x256xf32>
    %cst_90 = arith.constant 0.000000e+00 : f32
    %468 = vector.broadcast %cst_90 : f32 to vector<4x256xf32>
    %469 = arith.select %102, %467, %468 : vector<4x256xi1>, vector<4x256xf32>
    %470 = arith.addf %460, %469 : vector<4x256xf32>
    %cst_91 = arith.constant 0.000000e+00 : f32
    %471 = vector.broadcast %cst_91 : f32 to vector<4x256xf32>
    %472 = arith.select %77, %470, %471 : vector<4x256xi1>, vector<4x256xf32>
    %473 = arith.addf %326, %472 : vector<4x256xf32>
    %cst_92 = arith.constant 0.000000e+00 : f32
    %474 = vector.broadcast %cst_92 : f32 to vector<4x256xf32>
    %c227_i32 = arith.constant 227 : i32
    %475 = tpu.dynamic_rotate %26 by %c227_i32 dim 1 : vector<4x256xf32>, i32 -> vector<4x256xf32>
    %c35 = arith.constant 35 : index
    %476 = memref.load %arg5[%c35] : memref<98xf32, #tpu.memory_space<smem>>
    %c84 = arith.constant 84 : index
    %477 = memref.load %arg5[%c84] : memref<98xf32, #tpu.memory_space<smem>>
    %478 = vector.broadcast %476 : f32 to vector<4x256xf32>
    %479 = vector.broadcast %477 : f32 to vector<4x256xf32>
    %480 = arith.select %32, %478, %479 : vector<4x256xi1>, vector<4x256xf32>
    %481 = arith.mulf %480, %475 : vector<4x256xf32>
    %cst_93 = arith.constant 0.000000e+00 : f32
    %482 = vector.broadcast %cst_93 : f32 to vector<4x256xf32>
    %483 = arith.select %42, %481, %482 : vector<4x256xi1>, vector<4x256xf32>
    %484 = arith.addf %474, %483 : vector<4x256xf32>
    %c226_i32 = arith.constant 226 : i32
    %485 = tpu.dynamic_rotate %26 by %c226_i32 dim 1 : vector<4x256xf32>, i32 -> vector<4x256xf32>
    %c36 = arith.constant 36 : index
    %486 = memref.load %arg5[%c36] : memref<98xf32, #tpu.memory_space<smem>>
    %c85 = arith.constant 85 : index
    %487 = memref.load %arg5[%c85] : memref<98xf32, #tpu.memory_space<smem>>
    %488 = vector.broadcast %486 : f32 to vector<4x256xf32>
    %489 = vector.broadcast %487 : f32 to vector<4x256xf32>
    %490 = arith.select %32, %488, %489 : vector<4x256xi1>, vector<4x256xf32>
    %491 = arith.mulf %490, %485 : vector<4x256xf32>
    %cst_94 = arith.constant 0.000000e+00 : f32
    %492 = vector.broadcast %cst_94 : f32 to vector<4x256xf32>
    %493 = arith.select %52, %491, %492 : vector<4x256xi1>, vector<4x256xf32>
    %494 = arith.addf %484, %493 : vector<4x256xf32>
    %c225_i32 = arith.constant 225 : i32
    %495 = tpu.dynamic_rotate %26 by %c225_i32 dim 1 : vector<4x256xf32>, i32 -> vector<4x256xf32>
    %c37 = arith.constant 37 : index
    %496 = memref.load %arg5[%c37] : memref<98xf32, #tpu.memory_space<smem>>
    %c86 = arith.constant 86 : index
    %497 = memref.load %arg5[%c86] : memref<98xf32, #tpu.memory_space<smem>>
    %498 = vector.broadcast %496 : f32 to vector<4x256xf32>
    %499 = vector.broadcast %497 : f32 to vector<4x256xf32>
    %500 = arith.select %32, %498, %499 : vector<4x256xi1>, vector<4x256xf32>
    %501 = arith.mulf %500, %495 : vector<4x256xf32>
    %cst_95 = arith.constant 0.000000e+00 : f32
    %502 = vector.broadcast %cst_95 : f32 to vector<4x256xf32>
    %503 = arith.select %62, %501, %502 : vector<4x256xi1>, vector<4x256xf32>
    %504 = arith.addf %494, %503 : vector<4x256xf32>
    %c224_i32_96 = arith.constant 224 : i32
    %505 = tpu.dynamic_rotate %26 by %c224_i32_96 dim 1 : vector<4x256xf32>, i32 -> vector<4x256xf32>
    %c38 = arith.constant 38 : index
    %506 = memref.load %arg5[%c38] : memref<98xf32, #tpu.memory_space<smem>>
    %c87 = arith.constant 87 : index
    %507 = memref.load %arg5[%c87] : memref<98xf32, #tpu.memory_space<smem>>
    %508 = vector.broadcast %506 : f32 to vector<4x256xf32>
    %509 = vector.broadcast %507 : f32 to vector<4x256xf32>
    %510 = arith.select %32, %508, %509 : vector<4x256xi1>, vector<4x256xf32>
    %511 = arith.mulf %510, %505 : vector<4x256xf32>
    %cst_97 = arith.constant 0.000000e+00 : f32
    %512 = vector.broadcast %cst_97 : f32 to vector<4x256xf32>
    %513 = arith.select %72, %511, %512 : vector<4x256xi1>, vector<4x256xf32>
    %514 = arith.addf %504, %513 : vector<4x256xf32>
    %c223_i32 = arith.constant 223 : i32
    %515 = tpu.dynamic_rotate %26 by %c223_i32 dim 1 : vector<4x256xf32>, i32 -> vector<4x256xf32>
    %c39 = arith.constant 39 : index
    %516 = memref.load %arg5[%c39] : memref<98xf32, #tpu.memory_space<smem>>
    %c88 = arith.constant 88 : index
    %517 = memref.load %arg5[%c88] : memref<98xf32, #tpu.memory_space<smem>>
    %518 = vector.broadcast %516 : f32 to vector<4x256xf32>
    %519 = vector.broadcast %517 : f32 to vector<4x256xf32>
    %520 = arith.select %32, %518, %519 : vector<4x256xi1>, vector<4x256xf32>
    %521 = arith.mulf %520, %515 : vector<4x256xf32>
    %cst_98 = arith.constant 0.000000e+00 : f32
    %522 = vector.broadcast %cst_98 : f32 to vector<4x256xf32>
    %523 = arith.select %82, %521, %522 : vector<4x256xi1>, vector<4x256xf32>
    %524 = arith.addf %514, %523 : vector<4x256xf32>
    %c222_i32 = arith.constant 222 : i32
    %525 = tpu.dynamic_rotate %26 by %c222_i32 dim 1 : vector<4x256xf32>, i32 -> vector<4x256xf32>
    %c40 = arith.constant 40 : index
    %526 = memref.load %arg5[%c40] : memref<98xf32, #tpu.memory_space<smem>>
    %c89 = arith.constant 89 : index
    %527 = memref.load %arg5[%c89] : memref<98xf32, #tpu.memory_space<smem>>
    %528 = vector.broadcast %526 : f32 to vector<4x256xf32>
    %529 = vector.broadcast %527 : f32 to vector<4x256xf32>
    %530 = arith.select %32, %528, %529 : vector<4x256xi1>, vector<4x256xf32>
    %531 = arith.mulf %530, %525 : vector<4x256xf32>
    %cst_99 = arith.constant 0.000000e+00 : f32
    %532 = vector.broadcast %cst_99 : f32 to vector<4x256xf32>
    %533 = arith.select %92, %531, %532 : vector<4x256xi1>, vector<4x256xf32>
    %534 = arith.addf %524, %533 : vector<4x256xf32>
    %c221_i32 = arith.constant 221 : i32
    %535 = tpu.dynamic_rotate %26 by %c221_i32 dim 1 : vector<4x256xf32>, i32 -> vector<4x256xf32>
    %c41 = arith.constant 41 : index
    %536 = memref.load %arg5[%c41] : memref<98xf32, #tpu.memory_space<smem>>
    %c90 = arith.constant 90 : index
    %537 = memref.load %arg5[%c90] : memref<98xf32, #tpu.memory_space<smem>>
    %538 = vector.broadcast %536 : f32 to vector<4x256xf32>
    %539 = vector.broadcast %537 : f32 to vector<4x256xf32>
    %540 = arith.select %32, %538, %539 : vector<4x256xi1>, vector<4x256xf32>
    %541 = arith.mulf %540, %535 : vector<4x256xf32>
    %cst_100 = arith.constant 0.000000e+00 : f32
    %542 = vector.broadcast %cst_100 : f32 to vector<4x256xf32>
    %543 = arith.select %102, %541, %542 : vector<4x256xi1>, vector<4x256xf32>
    %544 = arith.addf %534, %543 : vector<4x256xf32>
    %cst_101 = arith.constant 0.000000e+00 : f32
    %545 = vector.broadcast %cst_101 : f32 to vector<4x256xf32>
    %546 = arith.select %87, %544, %545 : vector<4x256xi1>, vector<4x256xf32>
    %547 = arith.addf %399, %546 : vector<4x256xf32>
    %cst_102 = arith.constant 0.000000e+00 : f32
    %548 = vector.broadcast %cst_102 : f32 to vector<4x256xf32>
    %c211_i32 = arith.constant 211 : i32
    %549 = tpu.dynamic_rotate %26 by %c211_i32 dim 1 : vector<4x256xf32>, i32 -> vector<4x256xf32>
    %c42 = arith.constant 42 : index
    %550 = memref.load %arg5[%c42] : memref<98xf32, #tpu.memory_space<smem>>
    %c91 = arith.constant 91 : index
    %551 = memref.load %arg5[%c91] : memref<98xf32, #tpu.memory_space<smem>>
    %552 = vector.broadcast %550 : f32 to vector<4x256xf32>
    %553 = vector.broadcast %551 : f32 to vector<4x256xf32>
    %554 = arith.select %32, %552, %553 : vector<4x256xi1>, vector<4x256xf32>
    %555 = arith.mulf %554, %549 : vector<4x256xf32>
    %cst_103 = arith.constant 0.000000e+00 : f32
    %556 = vector.broadcast %cst_103 : f32 to vector<4x256xf32>
    %557 = arith.select %42, %555, %556 : vector<4x256xi1>, vector<4x256xf32>
    %558 = arith.addf %548, %557 : vector<4x256xf32>
    %c210_i32 = arith.constant 210 : i32
    %559 = tpu.dynamic_rotate %26 by %c210_i32 dim 1 : vector<4x256xf32>, i32 -> vector<4x256xf32>
    %c43 = arith.constant 43 : index
    %560 = memref.load %arg5[%c43] : memref<98xf32, #tpu.memory_space<smem>>
    %c92 = arith.constant 92 : index
    %561 = memref.load %arg5[%c92] : memref<98xf32, #tpu.memory_space<smem>>
    %562 = vector.broadcast %560 : f32 to vector<4x256xf32>
    %563 = vector.broadcast %561 : f32 to vector<4x256xf32>
    %564 = arith.select %32, %562, %563 : vector<4x256xi1>, vector<4x256xf32>
    %565 = arith.mulf %564, %559 : vector<4x256xf32>
    %cst_104 = arith.constant 0.000000e+00 : f32
    %566 = vector.broadcast %cst_104 : f32 to vector<4x256xf32>
    %567 = arith.select %52, %565, %566 : vector<4x256xi1>, vector<4x256xf32>
    %568 = arith.addf %558, %567 : vector<4x256xf32>
    %c209_i32 = arith.constant 209 : i32
    %569 = tpu.dynamic_rotate %26 by %c209_i32 dim 1 : vector<4x256xf32>, i32 -> vector<4x256xf32>
    %c44 = arith.constant 44 : index
    %570 = memref.load %arg5[%c44] : memref<98xf32, #tpu.memory_space<smem>>
    %c93 = arith.constant 93 : index
    %571 = memref.load %arg5[%c93] : memref<98xf32, #tpu.memory_space<smem>>
    %572 = vector.broadcast %570 : f32 to vector<4x256xf32>
    %573 = vector.broadcast %571 : f32 to vector<4x256xf32>
    %574 = arith.select %32, %572, %573 : vector<4x256xi1>, vector<4x256xf32>
    %575 = arith.mulf %574, %569 : vector<4x256xf32>
    %cst_105 = arith.constant 0.000000e+00 : f32
    %576 = vector.broadcast %cst_105 : f32 to vector<4x256xf32>
    %577 = arith.select %62, %575, %576 : vector<4x256xi1>, vector<4x256xf32>
    %578 = arith.addf %568, %577 : vector<4x256xf32>
    %c208_i32_106 = arith.constant 208 : i32
    %579 = tpu.dynamic_rotate %26 by %c208_i32_106 dim 1 : vector<4x256xf32>, i32 -> vector<4x256xf32>
    %c45 = arith.constant 45 : index
    %580 = memref.load %arg5[%c45] : memref<98xf32, #tpu.memory_space<smem>>
    %c94 = arith.constant 94 : index
    %581 = memref.load %arg5[%c94] : memref<98xf32, #tpu.memory_space<smem>>
    %582 = vector.broadcast %580 : f32 to vector<4x256xf32>
    %583 = vector.broadcast %581 : f32 to vector<4x256xf32>
    %584 = arith.select %32, %582, %583 : vector<4x256xi1>, vector<4x256xf32>
    %585 = arith.mulf %584, %579 : vector<4x256xf32>
    %cst_107 = arith.constant 0.000000e+00 : f32
    %586 = vector.broadcast %cst_107 : f32 to vector<4x256xf32>
    %587 = arith.select %72, %585, %586 : vector<4x256xi1>, vector<4x256xf32>
    %588 = arith.addf %578, %587 : vector<4x256xf32>
    %c207_i32 = arith.constant 207 : i32
    %589 = tpu.dynamic_rotate %26 by %c207_i32 dim 1 : vector<4x256xf32>, i32 -> vector<4x256xf32>
    %c46 = arith.constant 46 : index
    %590 = memref.load %arg5[%c46] : memref<98xf32, #tpu.memory_space<smem>>
    %c95 = arith.constant 95 : index
    %591 = memref.load %arg5[%c95] : memref<98xf32, #tpu.memory_space<smem>>
    %592 = vector.broadcast %590 : f32 to vector<4x256xf32>
    %593 = vector.broadcast %591 : f32 to vector<4x256xf32>
    %594 = arith.select %32, %592, %593 : vector<4x256xi1>, vector<4x256xf32>
    %595 = arith.mulf %594, %589 : vector<4x256xf32>
    %cst_108 = arith.constant 0.000000e+00 : f32
    %596 = vector.broadcast %cst_108 : f32 to vector<4x256xf32>
    %597 = arith.select %82, %595, %596 : vector<4x256xi1>, vector<4x256xf32>
    %598 = arith.addf %588, %597 : vector<4x256xf32>
    %c206_i32 = arith.constant 206 : i32
    %599 = tpu.dynamic_rotate %26 by %c206_i32 dim 1 : vector<4x256xf32>, i32 -> vector<4x256xf32>
    %c47 = arith.constant 47 : index
    %600 = memref.load %arg5[%c47] : memref<98xf32, #tpu.memory_space<smem>>
    %c96 = arith.constant 96 : index
    %601 = memref.load %arg5[%c96] : memref<98xf32, #tpu.memory_space<smem>>
    %602 = vector.broadcast %600 : f32 to vector<4x256xf32>
    %603 = vector.broadcast %601 : f32 to vector<4x256xf32>
    %604 = arith.select %32, %602, %603 : vector<4x256xi1>, vector<4x256xf32>
    %605 = arith.mulf %604, %599 : vector<4x256xf32>
    %cst_109 = arith.constant 0.000000e+00 : f32
    %606 = vector.broadcast %cst_109 : f32 to vector<4x256xf32>
    %607 = arith.select %92, %605, %606 : vector<4x256xi1>, vector<4x256xf32>
    %608 = arith.addf %598, %607 : vector<4x256xf32>
    %c205_i32 = arith.constant 205 : i32
    %609 = tpu.dynamic_rotate %26 by %c205_i32 dim 1 : vector<4x256xf32>, i32 -> vector<4x256xf32>
    %c48 = arith.constant 48 : index
    %610 = memref.load %arg5[%c48] : memref<98xf32, #tpu.memory_space<smem>>
    %c97 = arith.constant 97 : index
    %611 = memref.load %arg5[%c97] : memref<98xf32, #tpu.memory_space<smem>>
    %612 = vector.broadcast %610 : f32 to vector<4x256xf32>
    %613 = vector.broadcast %611 : f32 to vector<4x256xf32>
    %614 = arith.select %32, %612, %613 : vector<4x256xi1>, vector<4x256xf32>
    %615 = arith.mulf %614, %609 : vector<4x256xf32>
    %cst_110 = arith.constant 0.000000e+00 : f32
    %616 = vector.broadcast %cst_110 : f32 to vector<4x256xf32>
    %617 = arith.select %102, %615, %616 : vector<4x256xi1>, vector<4x256xf32>
    %618 = arith.addf %608, %617 : vector<4x256xf32>
    %cst_111 = arith.constant 0.000000e+00 : f32
    %619 = vector.broadcast %cst_111 : f32 to vector<4x256xf32>
    %620 = arith.select %97, %618, %619 : vector<4x256xi1>, vector<4x256xf32>
    %621 = arith.addf %473, %620 : vector<4x256xf32>
    %622 = arith.addf %621, %547 : vector<4x256xf32>
    %623 = vector.extract_strided_slice %622 {offsets = [0, 0], sizes = [2, 256], strides = [1, 1]} : vector<4x256xf32> to vector<2x256xf32>
    %624 = vector.extract_strided_slice %622 {offsets = [2, 0], sizes = [2, 256], strides = [1, 1]} : vector<4x256xf32> to vector<2x256xf32>
    %625 = arith.addf %623, %624 : vector<2x256xf32>
    %626 = arith.negf %625 : vector<2x256xf32>
    %627 = math.exp %626 : vector<2x256xf32>
    %cst_112 = arith.constant 1.000000e+00 : f32
    %628 = vector.broadcast %cst_112 : f32 to vector<2x256xf32>
    %629 = arith.addf %628, %627 : vector<2x256xf32>
    %630 = arith.divf %628, %629 : vector<2x256xf32>
    %631 = arith.mulf %630, %625 : vector<2x256xf32>
    %632 = vector.shape_cast %21 : vector<2x32xf32> to vector<2x32x1xf32>
    %633 = vector.broadcast %632 : vector<2x32x1xf32> to vector<2x32x256xf32>
    %634 = arith.mulf %633, %2 : vector<2x32x256xf32>
    %635 = vector.shape_cast %631 : vector<2x256xf32> to vector<2x1x256xf32>
    %636 = vector.broadcast %635 : vector<2x1x256xf32> to vector<2x32x256xf32>
    %637 = arith.addf %634, %636 : vector<2x32x256xf32>
    %638 = arith.negf %637 : vector<2x32x256xf32>
    %639 = math.exp %638 : vector<2x32x256xf32>
    %cst_113 = arith.constant 1.000000e+00 : f32
    %640 = vector.broadcast %cst_113 : f32 to vector<2x32x256xf32>
    %641 = arith.addf %640, %639 : vector<2x32x256xf32>
    %642 = arith.divf %640, %641 : vector<2x32x256xf32>
    %643 = arith.mulf %642, %2 : vector<2x32x256xf32>
    %c0_114 = arith.constant 0 : index
    %c0_115 = arith.constant 0 : index
    %c0_116 = arith.constant 0 : index
    %644 = vector.load %arg6[%c0_114, %c0_115, %c0_116] : memref<2x32x256xf32, #tpu.memory_space<vmem>>, vector<2x32x256xf32>
    tpu.vector_store %arg6[%c0_114, %c0_115, %c0_116], %643 {strides = array<i32>} : memref<2x32x256xf32, #tpu.memory_space<vmem>>, vector<2x32x256xf32>,
    return
  }
  func.func @transform_0(%arg0: i32) -> (i32, i32, i32) {
    %c0_i32 = arith.constant 0 : i32
    %c0_i32_0 = arith.constant 0 : i32
    %c0_i32_1 = arith.constant 0 : i32
    return %arg0, %c0_i32, %c0_i32_0 : i32, i32, i32
  }
  func.func @transform_1(%arg0: i32) -> (i32, i32, i32) {
    %c0_i32 = arith.constant 0 : i32
    %c0_i32_0 = arith.constant 0 : i32
    %c0_i32_1 = arith.constant 0 : i32
    return %arg0, %c0_i32, %c0_i32_0 : i32, i32, i32
  }
  func.func @transform_2(%arg0: i32) -> (i32, i32) {
    %c0_i32 = arith.constant 0 : i32
    %c0_i32_0 = arith.constant 0 : i32
    %c0_i32_1 = arith.constant 0 : i32
    return %c0_i32, %c0_i32_0 : i32, i32
  }
  func.func @transform_3(%arg0: i32) -> (i32, i32) {
    %c0_i32 = arith.constant 0 : i32
    %c0_i32_0 = arith.constant 0 : i32
    %c0_i32_1 = arith.constant 0 : i32
    return %c0_i32, %c0_i32_0 : i32, i32
  }
  func.func @transform_4(%arg0: i32) -> i32 {
    %c0_i32 = arith.constant 0 : i32
    %c0_i32_0 = arith.constant 0 : i32
    return %c0_i32 : i32
  }
  func.func @transform_5(%arg0: i32) -> (i32, i32, i32) {
    %c0_i32 = arith.constant 0 : i32
    %c0_i32_0 = arith.constant 0 : i32
    %c0_i32_1 = arith.constant 0 : i32
    return %arg0, %c0_i32, %c0_i32_0 : i32, i32, i32
  }
}

</mosaic_0001>

<llo_original>
// kernel: tpu_custom_call.1
$region0: #{tpu_custom_call.1}
  #allocation0 [shape = 'u32[]', space=smem, size = 0x4, offset = 0x4, fixed_abs, tag = 'smem constant byte address 0x4 - core index']
  #allocation1 [shape = 'u32[72,128]{1,0:T(1,128)}', space=vmem, size = 0x9000, scoped, tag = 'internal scratch']
  %s0 = inlined_call_operand.hbm [shape: f32[2,32,256], index: 0, kind: input, shape index: {}]
  %s1 = inlined_call_operand.hbm [shape: f32[2,32,256], index: 1, kind: input, shape index: {}]
  %s2 = inlined_call_operand.vmem [shape: f32[32,2], index: 2, kind: input, shape index: {}]
  %s3 = inlined_call_operand.vmem [shape: f32[2,32], index: 3, kind: input, shape index: {}]
  %s4 = inlined_call_operand.vmem [shape: f32[98], index: 4, kind: input, shape index: {}]
  %s5 = inlined_call_operand.hbm [shape: f32[2,32,256], index: 5, kind: output, shape index: {}]
  %s6 = sld [smem:[#allocation0]]
  $region42: #{tpu_custom_call.1} parent=0
    _
  %s8 = ssub.s32 1, %s6
  %s9 = scalar_select 0, %s8, %s6
  $region1: #{tpu_custom_call.1} parent=0
    #allocation2 [shape = 'u8[65536]{0}', space=vmem, size = 0x10000, scoped, tag = 'input window, operand 0, single buffered']
    #allocation3 [shape = 's32[1]{0}', space=sflag, size = 0x4, scoped, tag = 'scoped memory for tpu_custom_call.1']
    #allocation4 [shape = 's32[1]{0}', space=sflag, size = 0x4, scoped, tag = 'scoped memory for tpu_custom_call.1']
    #allocation5 [shape = 's32[1]{0}', space=sflag, size = 0x4, scoped, tag = 'scoped memory for tpu_custom_call.1']
    #allocation6 [shape = 'u8[65536]{0}', space=vmem, size = 0x10000, scoped, tag = 'input window, operand 1, single buffered']
    #allocation7 [shape = 's32[1]{0}', space=sflag, size = 0x4, scoped, tag = 'scoped memory for tpu_custom_call.1']
    #allocation8 [shape = 'u8[512]{0}', space=smem, size = 0x200, scoped, tag = 'input window, operand 4, single buffered']
    #allocation9 [shape = 'u8[65536]{0}', space=vmem, size = 0x10000, scoped, tag = 'output window, operand 0, single buffered']
    %10 = vsyncpa [#allocation3], 0
    %11 = vsyncpa [#allocation7], 0
    %12 = vsyncpa [#allocation5], 0
    %13 = vsyncpa [#allocation4], 0
    // Predicated region
    $region2: #{tpu_custom_call.1} parent=1 // pred_check
      _
    $region3: #{tpu_custom_call.1} parent=1 // pred_check_branch
      %15 = sbr.rel (0) target = $region5
    $region4: #{tpu_custom_call.1} parent=1 // pred_region
      %17 = vsyncadd [#allocation3], 0
      %s18 = sshll.u32 %s0, 4
      %s19 = int_to_ptr.hbm [resolvable:$true] %s18
      %s20 = sshll.u32 [#allocation2], 4
      %s21 = int_to_ptr.vmem [resolvable:$true] %s20
      %26 = dma.hbm_to_vmem [thread:$0]  %s19, 2048, %s21, [#allocation3], 256, 256, 16
    $region5: #{tpu_custom_call.1} parent=1 // pred_fallthru
      _
    // Predicated region
    $region6: #{tpu_custom_call.1} parent=1 // pred_check
      _
    $region7: #{tpu_custom_call.1} parent=1 // pred_check_branch
      %28 = sbr.rel (0) target = $region9
    $region8: #{tpu_custom_call.1} parent=1 // pred_region
      %30 = vsyncadd [#allocation7], 0
      %s31 = sshll.u32 %s1, 4
      %s32 = int_to_ptr.hbm [resolvable:$true] %s31
      %s33 = sshll.u32 [#allocation6], 4
      %s34 = int_to_ptr.vmem [resolvable:$true] %s33
      %39 = dma.hbm_to_vmem [thread:$0]  %s32, 2048, %s34, [#allocation7], 256, 256, 16
    $region9: #{tpu_custom_call.1} parent=1 // pred_fallthru
      _
    // Predicated region
    $region10: #{tpu_custom_call.1} parent=1 // pred_check
      _
    $region11: #{tpu_custom_call.1} parent=1 // pred_check_branch
      %41 = sbr.rel (0) target = $region13
    $region12: #{tpu_custom_call.1} parent=1 // pred_region
      _
    $region13: #{tpu_custom_call.1} parent=1 // pred_fallthru
      _
    // Predicated region
    $region14: #{tpu_custom_call.1} parent=1 // pred_check
      _
    $region15: #{tpu_custom_call.1} parent=1 // pred_check_branch
      %43 = sbr.rel (0) target = $region17
    $region16: #{tpu_custom_call.1} parent=1 // pred_region
      _
    $region17: #{tpu_custom_call.1} parent=1 // pred_fallthru
      _
    // Predicated region
    $region18: #{tpu_custom_call.1} parent=1 // pred_check
      _
    $region19: #{tpu_custom_call.1} parent=1 // pred_check_branch
      %45 = sbr.rel (0) target = $region21
    $region20: #{tpu_custom_call.1} parent=1 // pred_region
      %47 = vsyncadd [#allocation5], 0
      %s49 = sshll.u32 %s4, 4
      %s50 = int_to_ptr.vmem [resolvable:$true] %s49
      %52 = dma.vmem_to_smem %s50, 16, [#allocation8], [#allocation5]
    $region21: #{tpu_custom_call.1} parent=1 // pred_fallthru
      _
    // Predicated region
    $region22: #{tpu_custom_call.1} parent=1 // pred_check
      _
    $region23: #{tpu_custom_call.1} parent=1 // pred_check_branch
      %54 = sbr.rel (0) target = $region25
    $region24: #{tpu_custom_call.1} parent=1 // pred_region
      %56 = dma.done [#allocation3], 2048
    $region25: #{tpu_custom_call.1} parent=1 // pred_fallthru
      _
    // Predicated region
    $region26: #{tpu_custom_call.1} parent=1 // pred_check
      _
    $region27: #{tpu_custom_call.1} parent=1 // pred_check_branch
      %58 = sbr.rel (0) target = $region29
    $region28: #{tpu_custom_call.1} parent=1 // pred_region
      %60 = dma.done [#allocation7], 2048
    $region29: #{tpu_custom_call.1} parent=1 // pred_fallthru
      _
    // Predicated region
    $region30: #{tpu_custom_call.1} parent=1 // pred_check
      _
    $region31: #{tpu_custom_call.1} parent=1 // pred_check_branch
      %62 = sbr.rel (0) target = $region33
    $region32: #{tpu_custom_call.1} parent=1 // pred_region
      %64 = dma.done [#allocation5], 16
    $region33: #{tpu_custom_call.1} parent=1 // pred_fallthru
      _
    %65 = sfence
    %v66 = vld [vmem:[#allocation2] sm:$0xff]
    %v67 = vld [vmem:[#allocation2 + $0x8] sm:$0xff]
    %v68 = vld [vmem:[#allocation2 + $0x10] sm:$0xff]
    %v69 = vld [vmem:[#allocation2 + $0x18] sm:$0xff]
    %v70 = vld [vmem:[#allocation2 + $0x20] sm:$0xff]
    %v71 = vld [vmem:[#allocation2 + $0x28] sm:$0xff]
    %v72 = vld [vmem:[#allocation2 + $0x30] sm:$0xff]
    %v73 = vld [vmem:[#allocation2 + $0x38] sm:$0xff]
    %v74 = vld [vmem:[#allocation2 + $0x40] sm:$0xff]
    %v75 = vld [vmem:[#allocation2 + $0x48] sm:$0xff]
    %v76 = vld [vmem:[#allocation2 + $0x50] sm:$0xff]
    %v77 = vld [vmem:[#allocation2 + $0x58] sm:$0xff]
    %v78 = vld [vmem:[#allocation2 + $0x60] sm:$0xff]
    %v79 = vld [vmem:[#allocation2 + $0x68] sm:$0xff]
    %v80 = vld [vmem:[#allocation2 + $0x70] sm:$0xff]
    %v81 = vld [vmem:[#allocation2 + $0x78] sm:$0xff]
    %v82 = vld [vmem:[#allocation6] sm:$0xff]
    %v83 = vld [vmem:[#allocation6 + $0x8] sm:$0xff]
    %v84 = vld [vmem:[#allocation6 + $0x10] sm:$0xff]
    %v85 = vld [vmem:[#allocation6 + $0x18] sm:$0xff]
    %v86 = vld [vmem:[#allocation6 + $0x20] sm:$0xff]
    %v87 = vld [vmem:[#allocation6 + $0x28] sm:$0xff]
    %v88 = vld [vmem:[#allocation6 + $0x30] sm:$0xff]
    %v89 = vld [vmem:[#allocation6 + $0x38] sm:$0xff]
    %v90 = vld [vmem:[#allocation6 + $0x40] sm:$0xff]
    %v91 = vld [vmem:[#allocation6 + $0x48] sm:$0xff]
    %v92 = vld [vmem:[#allocation6 + $0x50] sm:$0xff]
    %v93 = vld [vmem:[#allocation6 + $0x58] sm:$0xff]
    %v94 = vld [vmem:[#allocation6 + $0x60] sm:$0xff]
    %v95 = vld [vmem:[#allocation6 + $0x68] sm:$0xff]
    %v96 = vld [vmem:[#allocation6 + $0x70] sm:$0xff]
    %v97 = vld [vmem:[#allocation6 + $0x78] sm:$0xff]
    %v98 = vadd.f32 %v66, %v82
    %v99 = vadd.f32 %v67, %v83
    %v100 = vadd.f32 %v68, %v84
    %v101 = vadd.f32 %v69, %v85
    %v102 = vadd.f32 %v70, %v86
    %v103 = vadd.f32 %v71, %v87
    %v104 = vadd.f32 %v72, %v88
    %v105 = vadd.f32 %v73, %v89
    %v106 = vadd.f32 %v74, %v90
    %v107 = vadd.f32 %v75, %v91
    %v108 = vadd.f32 %v76, %v92
    %v109 = vadd.f32 %v77, %v93
    %v110 = vadd.f32 %v78, %v94
    %v111 = vadd.f32 %v79, %v95
    %v112 = vadd.f32 %v80, %v96
    %v113 = vadd.f32 %v81, %v97
    %v114 = vadd.f32 %v98, %v99
    %115 = vadd.xlane.f32.xlu0 %v114
    %v116 = vpop.xlane.xlu0 %115
    %v117 = vadd.f32 %v100, %v101
    %118 = vadd.xlane.f32.xlu0 %v117
    %v119 = vpop.xlane.xlu0 %118
    %v120 = vadd.f32 %v102, %v103
    %121 = vadd.xlane.f32.xlu0 %v120
    %v122 = vpop.xlane.xlu0 %121
    %v123 = vadd.f32 %v104, %v105
    %124 = vadd.xlane.f32.xlu0 %v123
    %v125 = vpop.xlane.xlu0 %124
    %v126 = vadd.f32 %v106, %v107
    %127 = vadd.xlane.f32.xlu0 %v126
    %v128 = vpop.xlane.xlu0 %127
    %v129 = vadd.f32 %v108, %v109
    %130 = vadd.xlane.f32.xlu0 %v129
    %v131 = vpop.xlane.xlu0 %130
    %v132 = vadd.f32 %v110, %v111
    %133 = vadd.xlane.f32.xlu0 %v132
    %v134 = vpop.xlane.xlu0 %133
    %v135 = vadd.f32 %v112, %v113
    %136 = vadd.xlane.f32.xlu0 %v135
    %v137 = vpop.xlane.xlu0 %136
    %v138 = vrcp.pop 256.0
    %v139 = vmul.f32 256.0, %v138
    %v140 = vsub.f32 1.0, %v139
    %v141 = vmul.f32 %v138, %v140
    %v142 = vadd.f32 %v138, %v141
    %vm143 = vweird.f32 %v138
    %v144 = vsel %vm143, %v138, %v142
    %v145 = vmul.f32 %v116, %v144
    %v146 = vmul.f32 %v119, %v144
    %v147 = vmul.f32 %v122, %v144
    %v148 = vmul.f32 %v125, %v144
    %v149 = vmul.f32 %v128, %v144
    %v150 = vmul.f32 %v131, %v144
    %v151 = vmul.f32 %v134, %v144
    %v152 = vmul.f32 %v137, %v144
    %v153 = vmax.f32 %v98, %v99
    %154 = vmax.xlane.f32.xlu0 %v153
    %v155 = vpop.xlane.xlu0 %154
    %v156 = vmax.f32 %v100, %v101
    %157 = vmax.xlane.f32.xlu0 %v156
    %v158 = vpop.xlane.xlu0 %157
    %v159 = vmax.f32 %v102, %v103
    %160 = vmax.xlane.f32.xlu0 %v159
    %v161 = vpop.xlane.xlu0 %160
    %v162 = vmax.f32 %v104, %v105
    %163 = vmax.xlane.f32.xlu0 %v162
    %v164 = vpop.xlane.xlu0 %163
    %v165 = vmax.f32 %v106, %v107
    %166 = vmax.xlane.f32.xlu0 %v165
    %v167 = vpop.xlane.xlu0 %166
    %v168 = vmax.f32 %v108, %v109
    %169 = vmax.xlane.f32.xlu0 %v168
    %v170 = vpop.xlane.xlu0 %169
    %v171 = vmax.f32 %v110, %v111
    %172 = vmax.xlane.f32.xlu0 %v171
    %v173 = vpop.xlane.xlu0 %172
    %v174 = vmax.f32 %v112, %v113
    %175 = vmax.xlane.f32.xlu0 %v174
    %v176 = vpop.xlane.xlu0 %175
    %v185 = vlaneseq
    %v186 = vand.u32 %v185, 127
    %v187 = vperm.slane %v145, %v186
    %v188 = vadd.s32 %v186, 4294967288
    %v189 = vperm.slane %v146, %v188
    %vm190 = vcmask 130112
    %v191 = vsel %vm190, %v189, %v187
    %v192 = vadd.s32 %v186, 4294967280
    %v193 = vperm.slane %v147, %v192
    %vm194 = vcmask 195712
    %v195 = vsel %vm194, %v193, %v191
    %v196 = vadd.s32 %v186, 4294967272
    %v197 = vperm.slane %v148, %v196
    %vm198 = vcmask 261312
    %v199 = vsel %vm198, %v197, %v195
    %v200 = vperm.slane %v149, %v186
    %v201 = vperm.slane %v150, %v188
    %v202 = vsel %vm190, %v201, %v200
    %v203 = vperm.slane %v151, %v192
    %v204 = vsel %vm194, %v203, %v202
    %v205 = vperm.slane %v152, %v196
    %v206 = vsel %vm198, %v205, %v204
    %vm207 = vcmask 1041409
    %v208 = vsel %vm207, %v206, %v199
    %v218 = vperm.slane %v155, %v186
    %v219 = vperm.slane %v158, %v188
    %v220 = vsel %vm190, %v219, %v218
    %v221 = vperm.slane %v161, %v192
    %v222 = vsel %vm194, %v221, %v220
    %v223 = vperm.slane %v164, %v196
    %v224 = vsel %vm198, %v223, %v222
    %v225 = vperm.slane %v167, %v186
    %v226 = vperm.slane %v170, %v188
    %v227 = vsel %vm190, %v226, %v225
    %v228 = vperm.slane %v173, %v192
    %v229 = vsel %vm194, %v228, %v227
    %v230 = vperm.slane %v176, %v196
    %v231 = vsel %vm198, %v230, %v229
    %vm232 = vcmask 1043459
    %v233 = vsel %vm232, %v231, %v224
    %vm235 = vcmask 1041408
    %v236 = vsel %vm235, %v208, %v233
    %v237 = vld [vmem:[%s2] sm:$0xff]
    %v238 = vld [vmem:[%s2 + $0x8] sm:$0xff]
    %v239 = vld [vmem:[%s2 + $0x10] sm:$0xff]
    %v240 = vld [vmem:[%s2 + $0x18] sm:$0xff]
    %v241 = vld [vmem:[%s3] sm:$0x3]
    %vm242 = vcmask 261120
    %v244 = vsel %vm242, %v236, 0
    %246 = vmatpush.msra.mxu0 0.0
    %247 = vmatpush.msra.mxu0 0.0
    %248 = vmatpush.msra.mxu0 0.0
    %249 = vmatpush.msra.mxu0 0.0
    %250 = vmatpush.msra.mxu0 0.0
    %251 = vmatpush.msra.mxu0 0.0
    %252 = vmatpush.msra.mxu0 0.0
    %253 = vmatpush.msra.mxu0 0.0
    %254 = vmatpush.msra.mxu0 0.0
    %255 = vmatpush.msra.mxu0 0.0
    %256 = vmatpush.msra.mxu0 0.0
    %257 = vmatpush.msra.mxu0 0.0
    %258 = vmatpush.msra.mxu0 %v240
    %259 = vmatpush.msra.mxu0 %v239
    %260 = vmatpush.msra.mxu0 %v238
    %261 = vmatpush.msra.mxu0 %v237
    %262 = vmatmul.f32.gmra.mxu0 %v244
    %v263 = vpop.f32.mrf.mxu0
    %v264 = vadd.f32 0.0, %v263
    %265 = vdwg.mxu0
    %v266 = vmax.f32 %v264, 0.0
    %vm267 = vcmask 15360
    %v269 = vsel %vm267, %v266, 0
    %v272 = vsel %vm235, %v241, 0
    %274 = vmatpush.msra.mxu0 0.0
    %275 = vmatpush.msra.mxu0 0.0
    %276 = vmatpush.msra.mxu0 0.0
    %277 = vmatpush.msra.mxu0 0.0
    %278 = vmatpush.msra.mxu0 0.0
    %279 = vmatpush.msra.mxu0 0.0
    %280 = vmatpush.msra.mxu0 0.0
    %281 = vmatpush.msra.mxu0 0.0
    %282 = vmatpush.msra.mxu0 0.0
    %283 = vmatpush.msra.mxu0 0.0
    %284 = vmatpush.msra.mxu0 0.0
    %285 = vmatpush.msra.mxu0 0.0
    %286 = vmatpush.msra.mxu0 0.0
    %287 = vmatpush.msra.mxu0 0.0
    %288 = vmatpush.msra.mxu0 0.0
    %289 = vmatpush.msra.mxu0 %v272
    %290 = vmatmul.f32.gmra.mxu0 %v269
    %v291 = vpop.f32.mrf.mxu0
    %v292 = vadd.f32 0.0, %v291
    %293 = vdwg.mxu0
    %v295 = vrot.slane %v292, 2
    %v297 = vadd.f32 %v292, %v295
    %v298 = vxor.u32 %v297, 2147483648
    %v299 = vmul.f32 %v298, 1.442695
    %v300 = vpow.pop %v299
    %v301 = vadd.f32 %v300, 1.0
    %v302 = vrcp.pop %v301
    %v303 = vmul.f32 %v301, %v302
    %v304 = vsub.f32 1.0, %v303
    %v305 = vmul.f32 %v302, %v304
    %v306 = vadd.f32 %v302, %v305
    %vm307 = vweird.f32 %v301
    %vm308 = vweird.f32 %v302
    %vm309 = vmor %vm307, %vm308
    %v310 = vsel %vm309, %v302, %v306
    %v311 = vand.u32 2147483647, %v301
    %vm312 = vcmp.eq.f32.partialorder %v311, 8.507059e+37
    %v313 = vand.u32 %v301, 2147483648
    %v314 = vor.u32 1.1754944e-38, %v313
    %v315 = vsel %vm312, %v314, %v310
    %v316 = vmul.f32 1.0, %v315
    %v317 = vadd.f32 %v98, %v100
    %v318 = vadd.f32 %v317, %v102
    %v319 = vadd.f32 %v318, %v104
    %v320 = vrot.slane %v319, 4
    %v321 = vadd.f32 %v319, %v320
    %v322 = vrot.slane %v321, 2
    %v323 = vadd.f32 %v321, %v322
    %v324 = vrot.slane %v323, 1
    %v325 = vadd.f32 %v323, %v324
    %v326 = vadd.f32 %v99, %v101
    %v327 = vadd.f32 %v326, %v103
    %v328 = vadd.f32 %v327, %v105
    %v329 = vrot.slane %v328, 4
    %v330 = vadd.f32 %v328, %v329
    %v331 = vrot.slane %v330, 2
    %v332 = vadd.f32 %v330, %v331
    %v333 = vrot.slane %v332, 1
    %v334 = vadd.f32 %v332, %v333
    %v335 = vadd.f32 %v106, %v108
    %v336 = vadd.f32 %v335, %v110
    %v337 = vadd.f32 %v336, %v112
    %v338 = vrot.slane %v337, 4
    %v339 = vadd.f32 %v337, %v338
    %v340 = vrot.slane %v339, 2
    %v341 = vadd.f32 %v339, %v340
    %v342 = vrot.slane %v341, 1
    %v343 = vadd.f32 %v341, %v342
    %v344 = vadd.f32 %v107, %v109
    %v345 = vadd.f32 %v344, %v111
    %v346 = vadd.f32 %v345, %v113
    %v347 = vrot.slane %v346, 4
    %v348 = vadd.f32 %v346, %v347
    %v349 = vrot.slane %v348, 2
    %v350 = vadd.f32 %v348, %v349
    %v351 = vrot.slane %v350, 1
    %v352 = vadd.f32 %v350, %v351
    %v353 = vrcp.pop 32.0
    %v354 = vmul.f32 32.0, %v353
    %v355 = vsub.f32 1.0, %v354
    %v356 = vmul.f32 %v353, %v355
    %v357 = vadd.f32 %v353, %v356
    %vm358 = vweird.f32 %v353
    %v359 = vsel %vm358, %v353, %v357
    %v360 = vmul.f32 %v325, %v359
    %v361 = vmul.f32 %v334, %v359
    %v362 = vmul.f32 %v343, %v359
    %v363 = vmul.f32 %v352, %v359
    %v364 = vmax.f32 %v98, %v100
    %v365 = vmax.f32 %v364, %v102
    %v366 = vmax.f32 %v365, %v104
    %v367 = vrot.slane %v366, 4
    %v368 = vmax.f32 %v366, %v367
    %v369 = vrot.slane %v368, 2
    %v370 = vmax.f32 %v368, %v369
    %v371 = vrot.slane %v370, 1
    %v372 = vmax.f32 %v370, %v371
    %v373 = vmax.f32 %v99, %v101
    %v374 = vmax.f32 %v373, %v103
    %v375 = vmax.f32 %v374, %v105
    %v376 = vrot.slane %v375, 4
    %v377 = vmax.f32 %v375, %v376
    %v378 = vrot.slane %v377, 2
    %v379 = vmax.f32 %v377, %v378
    %v380 = vrot.slane %v379, 1
    %v381 = vmax.f32 %v379, %v380
    %v382 = vmax.f32 %v106, %v108
    %v383 = vmax.f32 %v382, %v110
    %v384 = vmax.f32 %v383, %v112
    %v385 = vrot.slane %v384, 4
    %v386 = vmax.f32 %v384, %v385
    %v387 = vrot.slane %v386, 2
    %v388 = vmax.f32 %v386, %v387
    %v389 = vrot.slane %v388, 1
    %v390 = vmax.f32 %v388, %v389
    %v391 = vmax.f32 %v107, %v109
    %v392 = vmax.f32 %v391, %v111
    %v393 = vmax.f32 %v392, %v113
    %v394 = vrot.slane %v393, 4
    %v395 = vmax.f32 %v393, %v394
    %v396 = vrot.slane %v395, 2
    %v397 = vmax.f32 %v395, %v396
    %v398 = vrot.slane %v397, 1
    %v399 = vmax.f32 %v397, %v398
    %v404 = vsel %vm207, %v362, %v360
    %v405 = vsel %vm207, %v363, %v361
    %v412 = vsel %vm232, %v390, %v372
    %v413 = vsel %vm232, %v399, %v381
    %v416 = vsel %vm235, %v404, %v412
    %v417 = vsel %vm235, %v405, %v413
    %v418 = vadd.s32 %v186, 128
    %v419 = vand.u32 %v186, 15
    %v420 = vand.u32 %v418, 15
    %v421 = vlaneseq
    %v422 = vshrl.u32 %v421, 7
    %vm423 = vcmp.lt.s32.totalorder %v422, 2
    %vm424 = vcmp.ge.s32.totalorder %v186, 48
    %vm425 = vcmp.ge.s32.totalorder %v418, 48
    %vm426 = vcmp.lt.s32.totalorder %v186, 256
    %vm427 = vcmp.lt.s32.totalorder %v418, 256
    %vm428 = vmand %vm424, %vm426
    %vm429 = vmand %vm425, %vm427
    %vm430 = vcmp.ge.s32.totalorder %v419, 3
    %vm431 = vcmp.ge.s32.totalorder %v420, 3
    %vm432 = vcmp.lt.s32.totalorder %v419, 16
    %vm433 = vcmp.lt.s32.totalorder %v420, 16
    %vm434 = vmand %vm430, %vm432
    %vm435 = vmand %vm431, %vm433
    %vm436 = vcmp.ge.s32.totalorder %v186, 32
    %vm437 = vcmp.ge.s32.totalorder %v418, 32
    %vm438 = vmand %vm436, %vm426
    %vm439 = vmand %vm437, %vm427
    %vm440 = vcmp.ge.s32.totalorder %v419, 2
    %vm441 = vcmp.ge.s32.totalorder %v420, 2
    %vm442 = vmand %vm440, %vm432
    %vm443 = vmand %vm441, %vm433
    %vm444 = vcmp.ge.s32.totalorder %v186, 16
    %vm445 = vcmp.ge.s32.totalorder %v418, 16
    %vm446 = vmand %vm444, %vm426
    %vm447 = vmand %vm445, %vm427
    %vm448 = vcmp.ge.s32.totalorder %v419, 1
    %vm449 = vcmp.ge.s32.totalorder %v420, 1
    %vm450 = vmand %vm448, %vm432
    %vm451 = vmand %vm449, %vm433
    %vm452 = vcmp.ge.s32.totalorder %v186, 0
    %vm453 = vcmp.ge.s32.totalorder %v418, 0
    %vm454 = vmand %vm452, %vm426
    %vm455 = vmand %vm453, %vm427
    %vm456 = vcmp.ge.s32.totalorder %v419, 0
    %vm457 = vcmp.ge.s32.totalorder %v420, 0
    %vm458 = vmand %vm456, %vm432
    %vm459 = vmand %vm457, %vm433
    %vm460 = vcmp.lt.s32.totalorder %v186, 240
    %vm461 = vcmp.lt.s32.totalorder %v418, 240
    %vm462 = vmand %vm452, %vm460
    %vm463 = vmand %vm453, %vm461
    %vm464 = vcmp.lt.s32.totalorder %v419, 15
    %vm465 = vcmp.lt.s32.totalorder %v420, 15
    %vm466 = vmand %vm456, %vm464
    %vm467 = vmand %vm457, %vm465
    %vm468 = vcmp.lt.s32.totalorder %v186, 224
    %vm469 = vcmp.lt.s32.totalorder %v418, 224
    %vm470 = vmand %vm452, %vm468
    %vm471 = vmand %vm453, %vm469
    %vm472 = vcmp.lt.s32.totalorder %v419, 14
    %vm473 = vcmp.lt.s32.totalorder %v420, 14
    %vm474 = vmand %vm456, %vm472
    %vm475 = vmand %vm457, %vm473
    %vm476 = vcmp.lt.s32.totalorder %v186, 208
    %vm477 = vcmp.lt.s32.totalorder %v418, 208
    %vm478 = vmand %vm452, %vm476
    %vm479 = vmand %vm453, %vm477
    %vm480 = vcmp.lt.s32.totalorder %v419, 13
    %vm481 = vcmp.lt.s32.totalorder %v420, 13
    %vm482 = vmand %vm456, %vm480
    %vm483 = vmand %vm457, %vm481
    %484 = vrot.lane.b32.xlu0 %v416, 51
    %v485 = vpop.permute.xlu0 %484
    %486 = vrot.lane.b32.xlu0 %v417, 51
    %v487 = vpop.permute.xlu0 %486
    %vm488 = vcmp.lt.s32.totalorder %v186, 51
    %v489 = vsel %vm488, %v485, %v487
    %v490 = vsel %vm488, %v487, %v485
    %s491 = sld [smem:[#allocation8]]
    %s492 = sld [smem:[#allocation8 + $0x31]]
    %v493 = vstv %s491
    %v494 = vstv %s492
    %v495 = vsel %vm423, %v493, %v494
    %v496 = vmul.f32 %v495, %v490
    %v497 = vmul.f32 %v495, %v489
    %v498 = vsel %vm434, %v496, 0.0
    %v499 = vsel %vm435, %v497, 0.0
    %v500 = vadd.f32 %v498, 0.0
    %v501 = vadd.f32 %v499, 0.0
    %502 = vrot.lane.b32.xlu0 %v416, 50
    %v503 = vpop.permute.xlu0 %502
    %504 = vrot.lane.b32.xlu0 %v417, 50
    %v505 = vpop.permute.xlu0 %504
    %vm506 = vcmp.lt.s32.totalorder %v186, 50
    %v507 = vsel %vm506, %v503, %v505
    %v508 = vsel %vm506, %v505, %v503
    %s509 = sld [smem:[#allocation8 + $0x1]]
    %s510 = sld [smem:[#allocation8 + $0x32]]
    %v511 = vstv %s509
    %v512 = vstv %s510
    %v513 = vsel %vm423, %v511, %v512
    %v514 = vmul.f32 %v513, %v508
    %v515 = vmul.f32 %v513, %v507
    %v516 = vsel %vm442, %v514, 0.0
    %v517 = vsel %vm443, %v515, 0.0
    %v518 = vadd.f32 %v500, %v516
    %v519 = vadd.f32 %v501, %v517
    %520 = vrot.lane.b32.xlu0 %v416, 49
    %v521 = vpop.permute.xlu0 %520
    %522 = vrot.lane.b32.xlu0 %v417, 49
    %v523 = vpop.permute.xlu0 %522
    %vm524 = vcmp.lt.s32.totalorder %v186, 49
    %v525 = vsel %vm524, %v521, %v523
    %v526 = vsel %vm524, %v523, %v521
    %s527 = sld [smem:[#allocation8 + $0x2]]
    %s528 = sld [smem:[#allocation8 + $0x33]]
    %v529 = vstv %s527
    %v530 = vstv %s528
    %v531 = vsel %vm423, %v529, %v530
    %v532 = vmul.f32 %v531, %v526
    %v533 = vmul.f32 %v531, %v525
    %v534 = vsel %vm450, %v532, 0.0
    %v535 = vsel %vm451, %v533, 0.0
    %v536 = vadd.f32 %v518, %v534
    %v537 = vadd.f32 %v519, %v535
    %538 = vrot.lane.b32.xlu0 %v416, 48
    %v539 = vpop.permute.xlu0 %538
    %540 = vrot.lane.b32.xlu0 %v417, 48
    %v541 = vpop.permute.xlu0 %540
    %vm542 = vcmp.lt.s32.totalorder %v186, 48
    %v543 = vsel %vm542, %v539, %v541
    %v544 = vsel %vm542, %v541, %v539
    %s545 = sld [smem:[#allocation8 + $0x3]]
    %s546 = sld [smem:[#allocation8 + $0x34]]
    %v547 = vstv %s545
    %v548 = vstv %s546
    %v549 = vsel %vm423, %v547, %v548
    %v550 = vmul.f32 %v549, %v544
    %v551 = vmul.f32 %v549, %v543
    %v552 = vsel %vm458, %v550, 0.0
    %v553 = vsel %vm459, %v551, 0.0
    %v554 = vadd.f32 %v536, %v552
    %v555 = vadd.f32 %v537, %v553
    %556 = vrot.lane.b32.xlu0 %v416, 47
    %v557 = vpop.permute.xlu0 %556
    %558 = vrot.lane.b32.xlu0 %v417, 47
    %v559 = vpop.permute.xlu0 %558
    %vm560 = vcmp.lt.s32.totalorder %v186, 47
    %v561 = vsel %vm560, %v557, %v559
    %v562 = vsel %vm560, %v559, %v557
    %s563 = sld [smem:[#allocation8 + $0x4]]
    %s564 = sld [smem:[#allocation8 + $0x35]]
    %v565 = vstv %s563
    %v566 = vstv %s564
    %v567 = vsel %vm423, %v565, %v566
    %v568 = vmul.f32 %v567, %v562
    %v569 = vmul.f32 %v567, %v561
    %v570 = vsel %vm466, %v568, 0.0
    %v571 = vsel %vm467, %v569, 0.0
    %v572 = vadd.f32 %v554, %v570
    %v573 = vadd.f32 %v555, %v571
    %574 = vrot.lane.b32.xlu0 %v416, 46
    %v575 = vpop.permute.xlu0 %574
    %576 = vrot.lane.b32.xlu0 %v417, 46
    %v577 = vpop.permute.xlu0 %576
    %vm578 = vcmp.lt.s32.totalorder %v186, 46
    %v579 = vsel %vm578, %v575, %v577
    %v580 = vsel %vm578, %v577, %v575
    %s581 = sld [smem:[#allocation8 + $0x5]]
    %s582 = sld [smem:[#allocation8 + $0x36]]
    %v583 = vstv %s581
    %v584 = vstv %s582
    %v585 = vsel %vm423, %v583, %v584
    %v586 = vmul.f32 %v585, %v580
    %v587 = vmul.f32 %v585, %v579
    %v588 = vsel %vm474, %v586, 0.0
    %v589 = vsel %vm475, %v587, 0.0
    %v590 = vadd.f32 %v572, %v588
    %v591 = vadd.f32 %v573, %v589
    %592 = vrot.lane.b32.xlu0 %v416, 45
    %v593 = vpop.permute.xlu0 %592
    %594 = vrot.lane.b32.xlu0 %v417, 45
    %v595 = vpop.permute.xlu0 %594
    %vm596 = vcmp.lt.s32.totalorder %v186, 45
    %v597 = vsel %vm596, %v593, %v595
    %v598 = vsel %vm596, %v595, %v593
    %s599 = sld [smem:[#allocation8 + $0x6]]
    %s600 = sld [smem:[#allocation8 + $0x37]]
    %v601 = vstv %s599
    %v602 = vstv %s600
    %v603 = vsel %vm423, %v601, %v602
    %v604 = vmul.f32 %v603, %v598
    %v605 = vmul.f32 %v603, %v597
    %v606 = vsel %vm482, %v604, 0.0
    %v607 = vsel %vm483, %v605, 0.0
    %v608 = vadd.f32 %v590, %v606
    %v609 = vadd.f32 %v591, %v607
    %v610 = vsel %vm428, %v608, 0.0
    %v611 = vsel %vm429, %v609, 0.0
    %v612 = vadd.f32 %v610, 0.0
    %v613 = vadd.f32 %v611, 0.0
    %614 = vrot.lane.b32.xlu0 %v416, 35
    %v615 = vpop.permute.xlu0 %614
    %616 = vrot.lane.b32.xlu0 %v417, 35
    %v617 = vpop.permute.xlu0 %616
    %vm618 = vcmp.lt.s32.totalorder %v186, 35
    %v619 = vsel %vm618, %v615, %v617
    %v620 = vsel %vm618, %v617, %v615
    %s621 = sld [smem:[#allocation8 + $0x7]]
    %s622 = sld [smem:[#allocation8 + $0x38]]
    %v623 = vstv %s621
    %v624 = vstv %s622
    %v625 = vsel %vm423, %v623, %v624
    %v626 = vmul.f32 %v625, %v620
    %v627 = vmul.f32 %v625, %v619
    %v628 = vsel %vm434, %v626, 0.0
    %v629 = vsel %vm435, %v627, 0.0
    %v630 = vadd.f32 %v628, 0.0
    %v631 = vadd.f32 %v629, 0.0
    %632 = vrot.lane.b32.xlu0 %v416, 34
    %v633 = vpop.permute.xlu0 %632
    %634 = vrot.lane.b32.xlu0 %v417, 34
    %v635 = vpop.permute.xlu0 %634
    %vm636 = vcmp.lt.s32.totalorder %v186, 34
    %v637 = vsel %vm636, %v633, %v635
    %v638 = vsel %vm636, %v635, %v633
    %s639 = sld [smem:[#allocation8 + $0x8]]
    %s640 = sld [smem:[#allocation8 + $0x39]]
    %v641 = vstv %s639
    %v642 = vstv %s640
    %v643 = vsel %vm423, %v641, %v642
    %v644 = vmul.f32 %v643, %v638
    %v645 = vmul.f32 %v643, %v637
    %v646 = vsel %vm442, %v644, 0.0
    %v647 = vsel %vm443, %v645, 0.0
    %v648 = vadd.f32 %v630, %v646
    %v649 = vadd.f32 %v631, %v647
    %650 = vrot.lane.b32.xlu0 %v416, 33
    %v651 = vpop.permute.xlu0 %650
    %652 = vrot.lane.b32.xlu0 %v417, 33
    %v653 = vpop.permute.xlu0 %652
    %vm654 = vcmp.lt.s32.totalorder %v186, 33
    %v655 = vsel %vm654, %v651, %v653
    %v656 = vsel %vm654, %v653, %v651
    %s657 = sld [smem:[#allocation8 + $0x9]]
    %s658 = sld [smem:[#allocation8 + $0x3a]]
    %v659 = vstv %s657
    %v660 = vstv %s658
    %v661 = vsel %vm423, %v659, %v660
    %v662 = vmul.f32 %v661, %v656
    %v663 = vmul.f32 %v661, %v655
    %v664 = vsel %vm450, %v662, 0.0
    %v665 = vsel %vm451, %v663, 0.0
    %v666 = vadd.f32 %v648, %v664
    %v667 = vadd.f32 %v649, %v665
    %668 = vrot.lane.b32.xlu0 %v416, 32
    %v669 = vpop.permute.xlu0 %668
    %670 = vrot.lane.b32.xlu0 %v417, 32
    %v671 = vpop.permute.xlu0 %670
    %vm672 = vcmp.lt.s32.totalorder %v186, 32
    %v673 = vsel %vm672, %v669, %v671
    %v674 = vsel %vm672, %v671, %v669
    %s675 = sld [smem:[#allocation8 + $0xa]]
    %s676 = sld [smem:[#allocation8 + $0x3b]]
    %v677 = vstv %s675
    %v678 = vstv %s676
    %v679 = vsel %vm423, %v677, %v678
    %v680 = vmul.f32 %v679, %v674
    %v681 = vmul.f32 %v679, %v673
    %v682 = vsel %vm458, %v680, 0.0
    %v683 = vsel %vm459, %v681, 0.0
    %v684 = vadd.f32 %v666, %v682
    %v685 = vadd.f32 %v667, %v683
    %686 = vrot.lane.b32.xlu0 %v416, 31
    %v687 = vpop.permute.xlu0 %686
    %688 = vrot.lane.b32.xlu0 %v417, 31
    %v689 = vpop.permute.xlu0 %688
    %vm690 = vcmp.lt.s32.totalorder %v186, 31
    %v691 = vsel %vm690, %v687, %v689
    %v692 = vsel %vm690, %v689, %v687
    %s693 = sld [smem:[#allocation8 + $0xb]]
    %s694 = sld [smem:[#allocation8 + $0x3c]]
    %v695 = vstv %s693
    %v696 = vstv %s694
    %v697 = vsel %vm423, %v695, %v696
    %v698 = vmul.f32 %v697, %v692
    %v699 = vmul.f32 %v697, %v691
    %v700 = vsel %vm466, %v698, 0.0
    %v701 = vsel %vm467, %v699, 0.0
    %v702 = vadd.f32 %v684, %v700
    %v703 = vadd.f32 %v685, %v701
    %704 = vrot.lane.b32.xlu0 %v416, 30
    %v705 = vpop.permute.xlu0 %704
    %706 = vrot.lane.b32.xlu0 %v417, 30
    %v707 = vpop.permute.xlu0 %706
    %vm708 = vcmp.lt.s32.totalorder %v186, 30
    %v709 = vsel %vm708, %v705, %v707
    %v710 = vsel %vm708, %v707, %v705
    %s711 = sld [smem:[#allocation8 + $0xc]]
    %s712 = sld [smem:[#allocation8 + $0x3d]]
    %v713 = vstv %s711
    %v714 = vstv %s712
    %v715 = vsel %vm423, %v713, %v714
    %v716 = vmul.f32 %v715, %v710
    %v717 = vmul.f32 %v715, %v709
    %v718 = vsel %vm474, %v716, 0.0
    %v719 = vsel %vm475, %v717, 0.0
    %v720 = vadd.f32 %v702, %v718
    %v721 = vadd.f32 %v703, %v719
    %722 = vrot.lane.b32.xlu0 %v416, 29
    %v723 = vpop.permute.xlu0 %722
    %724 = vrot.lane.b32.xlu0 %v417, 29
    %v725 = vpop.permute.xlu0 %724
    %vm726 = vcmp.lt.s32.totalorder %v186, 29
    %v727 = vsel %vm726, %v723, %v725
    %v728 = vsel %vm726, %v725, %v723
    %s729 = sld [smem:[#allocation8 + $0xd]]
    %s730 = sld [smem:[#allocation8 + $0x3e]]
    %v731 = vstv %s729
    %v732 = vstv %s730
    %v733 = vsel %vm423, %v731, %v732
    %v734 = vmul.f32 %v733, %v728
    %v735 = vmul.f32 %v733, %v727
    %v736 = vsel %vm482, %v734, 0.0
    %v737 = vsel %vm483, %v735, 0.0
    %v738 = vadd.f32 %v720, %v736
    %v739 = vadd.f32 %v721, %v737
    %v740 = vsel %vm438, %v738, 0.0
    %v741 = vsel %vm439, %v739, 0.0
    %v742 = vadd.f32 %v740, 0.0
    %v743 = vadd.f32 %v741, 0.0
    %744 = vrot.lane.b32.xlu0 %v416, 19
    %v745 = vpop.permute.xlu0 %744
    %746 = vrot.lane.b32.xlu0 %v417, 19
    %v747 = vpop.permute.xlu0 %746
    %vm748 = vcmp.lt.s32.totalorder %v186, 19
    %v749 = vsel %vm748, %v745, %v747
    %v750 = vsel %vm748, %v747, %v745
    %s751 = sld [smem:[#allocation8 + $0xe]]
    %s752 = sld [smem:[#allocation8 + $0x3f]]
    %v753 = vstv %s751
    %v754 = vstv %s752
    %v755 = vsel %vm423, %v753, %v754
    %v756 = vmul.f32 %v755, %v750
    %v757 = vmul.f32 %v755, %v749
    %v758 = vsel %vm434, %v756, 0.0
    %v759 = vsel %vm435, %v757, 0.0
    %v760 = vadd.f32 %v758, 0.0
    %v761 = vadd.f32 %v759, 0.0
    %762 = vrot.lane.b32.xlu0 %v416, 18
    %v763 = vpop.permute.xlu0 %762
    %764 = vrot.lane.b32.xlu0 %v417, 18
    %v765 = vpop.permute.xlu0 %764
    %vm766 = vcmp.lt.s32.totalorder %v186, 18
    %v767 = vsel %vm766, %v763, %v765
    %v768 = vsel %vm766, %v765, %v763
    %s769 = sld [smem:[#allocation8 + $0xf]]
    %s770 = sld [smem:[#allocation8 + $0x40]]
    %v771 = vstv %s769
    %v772 = vstv %s770
    %v773 = vsel %vm423, %v771, %v772
    %v774 = vmul.f32 %v773, %v768
    %v775 = vmul.f32 %v773, %v767
    %v776 = vsel %vm442, %v774, 0.0
    %v777 = vsel %vm443, %v775, 0.0
    %v778 = vadd.f32 %v760, %v776
    %v779 = vadd.f32 %v761, %v777
    %780 = vrot.lane.b32.xlu0 %v416, 17
    %v781 = vpop.permute.xlu0 %780
    %782 = vrot.lane.b32.xlu0 %v417, 17
    %v783 = vpop.permute.xlu0 %782
    %vm784 = vcmp.lt.s32.totalorder %v186, 17
    %v785 = vsel %vm784, %v781, %v783
    %v786 = vsel %vm784, %v783, %v781
    %s787 = sld [smem:[#allocation8 + $0x10]]
    %s788 = sld [smem:[#allocation8 + $0x41]]
    %v789 = vstv %s787
    %v790 = vstv %s788
    %v791 = vsel %vm423, %v789, %v790
    %v792 = vmul.f32 %v791, %v786
    %v793 = vmul.f32 %v791, %v785
    %v794 = vsel %vm450, %v792, 0.0
    %v795 = vsel %vm451, %v793, 0.0
    %v796 = vadd.f32 %v778, %v794
    %v797 = vadd.f32 %v779, %v795
    %798 = vrot.lane.b32.xlu0 %v416, 16
    %v799 = vpop.permute.xlu0 %798
    %800 = vrot.lane.b32.xlu0 %v417, 16
    %v801 = vpop.permute.xlu0 %800
    %vm802 = vcmp.lt.s32.totalorder %v186, 16
    %v803 = vsel %vm802, %v799, %v801
    %v804 = vsel %vm802, %v801, %v799
    %s805 = sld [smem:[#allocation8 + $0x11]]
    %s806 = sld [smem:[#allocation8 + $0x42]]
    %v807 = vstv %s805
    %v808 = vstv %s806
    %v809 = vsel %vm423, %v807, %v808
    %v810 = vmul.f32 %v809, %v804
    %v811 = vmul.f32 %v809, %v803
    %v812 = vsel %vm458, %v810, 0.0
    %v813 = vsel %vm459, %v811, 0.0
    %v814 = vadd.f32 %v796, %v812
    %v815 = vadd.f32 %v797, %v813
    %816 = vrot.lane.b32.xlu0 %v416, 15
    %v817 = vpop.permute.xlu0 %816
    %818 = vrot.lane.b32.xlu0 %v417, 15
    %v819 = vpop.permute.xlu0 %818
    %vm820 = vcmp.lt.s32.totalorder %v186, 15
    %v821 = vsel %vm820, %v817, %v819
    %v822 = vsel %vm820, %v819, %v817
    %s823 = sld [smem:[#allocation8 + $0x12]]
    %s824 = sld [smem:[#allocation8 + $0x43]]
    %v825 = vstv %s823
    %v826 = vstv %s824
    %v827 = vsel %vm423, %v825, %v826
    %v828 = vmul.f32 %v827, %v822
    %v829 = vmul.f32 %v827, %v821
    %v830 = vsel %vm466, %v828, 0.0
    %v831 = vsel %vm467, %v829, 0.0
    %v832 = vadd.f32 %v814, %v830
    %v833 = vadd.f32 %v815, %v831
    %834 = vrot.lane.b32.xlu0 %v416, 14
    %v835 = vpop.permute.xlu0 %834
    %836 = vrot.lane.b32.xlu0 %v417, 14
    %v837 = vpop.permute.xlu0 %836
    %vm838 = vcmp.lt.s32.totalorder %v186, 14
    %v839 = vsel %vm838, %v835, %v837
    %v840 = vsel %vm838, %v837, %v835
    %s841 = sld [smem:[#allocation8 + $0x13]]
    %s842 = sld [smem:[#allocation8 + $0x44]]
    %v843 = vstv %s841
    %v844 = vstv %s842
    %v845 = vsel %vm423, %v843, %v844
    %v846 = vmul.f32 %v845, %v840
    %v847 = vmul.f32 %v845, %v839
    %v848 = vsel %vm474, %v846, 0.0
    %v849 = vsel %vm475, %v847, 0.0
    %v850 = vadd.f32 %v832, %v848
    %v851 = vadd.f32 %v833, %v849
    %852 = vrot.lane.b32.xlu0 %v416, 13
    %v853 = vpop.permute.xlu0 %852
    %854 = vrot.lane.b32.xlu0 %v417, 13
    %v855 = vpop.permute.xlu0 %854
    %vm856 = vcmp.lt.s32.totalorder %v186, 13
    %v857 = vsel %vm856, %v853, %v855
    %v858 = vsel %vm856, %v855, %v853
    %s859 = sld [smem:[#allocation8 + $0x14]]
    %s860 = sld [smem:[#allocation8 + $0x45]]
    %v861 = vstv %s859
    %v862 = vstv %s860
    %v863 = vsel %vm423, %v861, %v862
    %v864 = vmul.f32 %v863, %v858
    %v865 = vmul.f32 %v863, %v857
    %v866 = vsel %vm482, %v864, 0.0
    %v867 = vsel %vm483, %v865, 0.0
    %v868 = vadd.f32 %v850, %v866
    %v869 = vadd.f32 %v851, %v867
    %v870 = vsel %vm446, %v868, 0.0
    %v871 = vsel %vm447, %v869, 0.0
    %v872 = vadd.f32 %v612, %v870
    %v873 = vadd.f32 %v613, %v871
    %874 = vrot.lane.b32.xlu0 %v416, 3
    %v875 = vpop.permute.xlu0 %874
    %876 = vrot.lane.b32.xlu0 %v417, 3
    %v877 = vpop.permute.xlu0 %876
    %vm878 = vcmp.lt.s32.totalorder %v186, 3
    %v879 = vsel %vm878, %v875, %v877
    %v880 = vsel %vm878, %v877, %v875
    %s881 = sld [smem:[#allocation8 + $0x15]]
    %s882 = sld [smem:[#allocation8 + $0x46]]
    %v883 = vstv %s881
    %v884 = vstv %s882
    %v885 = vsel %vm423, %v883, %v884
    %v886 = vmul.f32 %v885, %v880
    %v887 = vmul.f32 %v885, %v879
    %v888 = vsel %vm434, %v886, 0.0
    %v889 = vsel %vm435, %v887, 0.0
    %v890 = vadd.f32 %v888, 0.0
    %v891 = vadd.f32 %v889, 0.0
    %892 = vrot.lane.b32.xlu0 %v416, 2
    %v893 = vpop.permute.xlu0 %892
    %894 = vrot.lane.b32.xlu0 %v417, 2
    %v895 = vpop.permute.xlu0 %894
    %vm896 = vcmp.lt.s32.totalorder %v186, 2
    %v897 = vsel %vm896, %v893, %v895
    %v898 = vsel %vm896, %v895, %v893
    %s899 = sld [smem:[#allocation8 + $0x16]]
    %s900 = sld [smem:[#allocation8 + $0x47]]
    %v901 = vstv %s899
    %v902 = vstv %s900
    %v903 = vsel %vm423, %v901, %v902
    %v904 = vmul.f32 %v903, %v898
    %v905 = vmul.f32 %v903, %v897
    %v906 = vsel %vm442, %v904, 0.0
    %v907 = vsel %vm443, %v905, 0.0
    %v908 = vadd.f32 %v890, %v906
    %v909 = vadd.f32 %v891, %v907
    %910 = vrot.lane.b32.xlu0 %v416, 1
    %v911 = vpop.permute.xlu0 %910
    %912 = vrot.lane.b32.xlu0 %v417, 1
    %v913 = vpop.permute.xlu0 %912
    %vm914 = vcmp.lt.s32.totalorder %v186, 1
    %v915 = vsel %vm914, %v911, %v913
    %v916 = vsel %vm914, %v913, %v911
    %s917 = sld [smem:[#allocation8 + $0x17]]
    %s918 = sld [smem:[#allocation8 + $0x48]]
    %v919 = vstv %s917
    %v920 = vstv %s918
    %v921 = vsel %vm423, %v919, %v920
    %v922 = vmul.f32 %v921, %v916
    %v923 = vmul.f32 %v921, %v915
    %v924 = vsel %vm450, %v922, 0.0
    %v925 = vsel %vm451, %v923, 0.0
    %v926 = vadd.f32 %v908, %v924
    %v927 = vadd.f32 %v909, %v925
    %s928 = sld [smem:[#allocation8 + $0x18]]
    %s929 = sld [smem:[#allocation8 + $0x49]]
    %v930 = vstv %s928
    %v931 = vstv %s929
    %v932 = vsel %vm423, %v930, %v931
    %v933 = vmul.f32 %v932, %v416
    %v934 = vmul.f32 %v932, %v417
    %v935 = vsel %vm458, %v933, 0.0
    %v936 = vsel %vm459, %v934, 0.0
    %v937 = vadd.f32 %v926, %v935
    %v938 = vadd.f32 %v927, %v936
    %939 = vrot.lane.b32.xlu0 %v416, 127
    %v940 = vpop.permute.xlu0 %939
    %941 = vrot.lane.b32.xlu0 %v417, 127
    %v942 = vpop.permute.xlu0 %941
    %vm943 = vcmp.lt.s32.totalorder %v186, 127
    %v944 = vsel %vm943, %v940, %v942
    %v945 = vsel %vm943, %v942, %v940
    %s946 = sld [smem:[#allocation8 + $0x19]]
    %s947 = sld [smem:[#allocation8 + $0x4a]]
    %v948 = vstv %s946
    %v949 = vstv %s947
    %v950 = vsel %vm423, %v948, %v949
    %v951 = vmul.f32 %v950, %v944
    %v952 = vmul.f32 %v950, %v945
    %v953 = vsel %vm466, %v951, 0.0
    %v954 = vsel %vm467, %v952, 0.0
    %v955 = vadd.f32 %v937, %v953
    %v956 = vadd.f32 %v938, %v954
    %957 = vrot.lane.b32.xlu0 %v416, 126
    %v958 = vpop.permute.xlu0 %957
    %959 = vrot.lane.b32.xlu0 %v417, 126
    %v960 = vpop.permute.xlu0 %959
    %vm961 = vcmp.lt.s32.totalorder %v186, 126
    %v962 = vsel %vm961, %v958, %v960
    %v963 = vsel %vm961, %v960, %v958
    %s964 = sld [smem:[#allocation8 + $0x1a]]
    %s965 = sld [smem:[#allocation8 + $0x4b]]
    %v966 = vstv %s964
    %v967 = vstv %s965
    %v968 = vsel %vm423, %v966, %v967
    %v969 = vmul.f32 %v968, %v962
    %v970 = vmul.f32 %v968, %v963
    %v971 = vsel %vm474, %v969, 0.0
    %v972 = vsel %vm475, %v970, 0.0
    %v973 = vadd.f32 %v955, %v971
    %v974 = vadd.f32 %v956, %v972
    %975 = vrot.lane.b32.xlu0 %v416, 125
    %v976 = vpop.permute.xlu0 %975
    %977 = vrot.lane.b32.xlu0 %v417, 125
    %v978 = vpop.permute.xlu0 %977
    %vm979 = vcmp.lt.s32.totalorder %v186, 125
    %v980 = vsel %vm979, %v976, %v978
    %v981 = vsel %vm979, %v978, %v976
    %s982 = sld [smem:[#allocation8 + $0x1b]]
    %s983 = sld [smem:[#allocation8 + $0x4c]]
    %v984 = vstv %s982
    %v985 = vstv %s983
    %v986 = vsel %vm423, %v984, %v985
    %v987 = vmul.f32 %v986, %v980
    %v988 = vmul.f32 %v986, %v981
    %v989 = vsel %vm482, %v987, 0.0
    %v990 = vsel %vm483, %v988, 0.0
    %v991 = vadd.f32 %v973, %v989
    %v992 = vadd.f32 %v974, %v990
    %v993 = vsel %vm454, %v991, 0.0
    %v994 = vsel %vm455, %v992, 0.0
    %v995 = vadd.f32 %v742, %v993
    %v996 = vadd.f32 %v743, %v994
    %997 = vrot.lane.b32.xlu0 %v416, 115
    %v998 = vpop.permute.xlu0 %997
    %999 = vrot.lane.b32.xlu0 %v417, 115
    %v1000 = vpop.permute.xlu0 %999
    %vm1001 = vcmp.lt.s32.totalorder %v186, 115
    %v1002 = vsel %vm1001, %v998, %v1000
    %v1003 = vsel %vm1001, %v1000, %v998
    %s1004 = sld [smem:[#allocation8 + $0x1c]]
    %s1005 = sld [smem:[#allocation8 + $0x4d]]
    %v1006 = vstv %s1004
    %v1007 = vstv %s1005
    %v1008 = vsel %vm423, %v1006, %v1007
    %v1009 = vmul.f32 %v1008, %v1002
    %v1010 = vmul.f32 %v1008, %v1003
    %v1011 = vsel %vm434, %v1009, 0.0
    %v1012 = vsel %vm435, %v1010, 0.0
    %v1013 = vadd.f32 %v1011, 0.0
    %v1014 = vadd.f32 %v1012, 0.0
    %1015 = vrot.lane.b32.xlu0 %v416, 114
    %v1016 = vpop.permute.xlu0 %1015
    %1017 = vrot.lane.b32.xlu0 %v417, 114
    %v1018 = vpop.permute.xlu0 %1017
    %vm1019 = vcmp.lt.s32.totalorder %v186, 114
    %v1020 = vsel %vm1019, %v1016, %v1018
    %v1021 = vsel %vm1019, %v1018, %v1016
    %s1022 = sld [smem:[#allocation8 + $0x1d]]
    %s1023 = sld [smem:[#allocation8 + $0x4e]]
    %v1024 = vstv %s1022
    %v1025 = vstv %s1023
    %v1026 = vsel %vm423, %v1024, %v1025
    %v1027 = vmul.f32 %v1026, %v1020
    %v1028 = vmul.f32 %v1026, %v1021
    %v1029 = vsel %vm442, %v1027, 0.0
    %v1030 = vsel %vm443, %v1028, 0.0
    %v1031 = vadd.f32 %v1013, %v1029
    %v1032 = vadd.f32 %v1014, %v1030
    %1033 = vrot.lane.b32.xlu0 %v416, 113
    %v1034 = vpop.permute.xlu0 %1033
    %1035 = vrot.lane.b32.xlu0 %v417, 113
    %v1036 = vpop.permute.xlu0 %1035
    %vm1037 = vcmp.lt.s32.totalorder %v186, 113
    %v1038 = vsel %vm1037, %v1034, %v1036
    %v1039 = vsel %vm1037, %v1036, %v1034
    %s1040 = sld [smem:[#allocation8 + $0x1e]]
    %s1041 = sld [smem:[#allocation8 + $0x4f]]
    %v1042 = vstv %s1040
    %v1043 = vstv %s1041
    %v1044 = vsel %vm423, %v1042, %v1043
    %v1045 = vmul.f32 %v1044, %v1038
    %v1046 = vmul.f32 %v1044, %v1039
    %v1047 = vsel %vm450, %v1045, 0.0
    %v1048 = vsel %vm451, %v1046, 0.0
    %v1049 = vadd.f32 %v1031, %v1047
    %v1050 = vadd.f32 %v1032, %v1048
    %1051 = vrot.lane.b32.xlu0 %v416, 112
    %v1052 = vpop.permute.xlu0 %1051
    %1053 = vrot.lane.b32.xlu0 %v417, 112
    %v1054 = vpop.permute.xlu0 %1053
    %vm1055 = vcmp.lt.s32.totalorder %v186, 112
    %v1056 = vsel %vm1055, %v1052, %v1054
    %v1057 = vsel %vm1055, %v1054, %v1052
    %s1058 = sld [smem:[#allocation8 + $0x1f]]
    %s1059 = sld [smem:[#allocation8 + $0x50]]
    %v1060 = vstv %s1058
    %v1061 = vstv %s1059
    %v1062 = vsel %vm423, %v1060, %v1061
    %v1063 = vmul.f32 %v1062, %v1056
    %v1064 = vmul.f32 %v1062, %v1057
    %v1065 = vsel %vm458, %v1063, 0.0
    %v1066 = vsel %vm459, %v1064, 0.0
    %v1067 = vadd.f32 %v1049, %v1065
    %v1068 = vadd.f32 %v1050, %v1066
    %1069 = vrot.lane.b32.xlu0 %v416, 111
    %v1070 = vpop.permute.xlu0 %1069
    %1071 = vrot.lane.b32.xlu0 %v417, 111
    %v1072 = vpop.permute.xlu0 %1071
    %vm1073 = vcmp.lt.s32.totalorder %v186, 111
    %v1074 = vsel %vm1073, %v1070, %v1072
    %v1075 = vsel %vm1073, %v1072, %v1070
    %s1076 = sld [smem:[#allocation8 + $0x20]]
    %s1077 = sld [smem:[#allocation8 + $0x51]]
    %v1078 = vstv %s1076
    %v1079 = vstv %s1077
    %v1080 = vsel %vm423, %v1078, %v1079
    %v1081 = vmul.f32 %v1080, %v1074
    %v1082 = vmul.f32 %v1080, %v1075
    %v1083 = vsel %vm466, %v1081, 0.0
    %v1084 = vsel %vm467, %v1082, 0.0
    %v1085 = vadd.f32 %v1067, %v1083
    %v1086 = vadd.f32 %v1068, %v1084
    %1087 = vrot.lane.b32.xlu0 %v416, 110
    %v1088 = vpop.permute.xlu0 %1087
    %1089 = vrot.lane.b32.xlu0 %v417, 110
    %v1090 = vpop.permute.xlu0 %1089
    %vm1091 = vcmp.lt.s32.totalorder %v186, 110
    %v1092 = vsel %vm1091, %v1088, %v1090
    %v1093 = vsel %vm1091, %v1090, %v1088
    %s1094 = sld [smem:[#allocation8 + $0x21]]
    %s1095 = sld [smem:[#allocation8 + $0x52]]
    %v1096 = vstv %s1094
    %v1097 = vstv %s1095
    %v1098 = vsel %vm423, %v1096, %v1097
    %v1099 = vmul.f32 %v1098, %v1092
    %v1100 = vmul.f32 %v1098, %v1093
    %v1101 = vsel %vm474, %v1099, 0.0
    %v1102 = vsel %vm475, %v1100, 0.0
    %v1103 = vadd.f32 %v1085, %v1101
    %v1104 = vadd.f32 %v1086, %v1102
    %1105 = vrot.lane.b32.xlu0 %v416, 109
    %v1106 = vpop.permute.xlu0 %1105
    %1107 = vrot.lane.b32.xlu0 %v417, 109
    %v1108 = vpop.permute.xlu0 %1107
    %vm1109 = vcmp.lt.s32.totalorder %v186, 109
    %v1110 = vsel %vm1109, %v1106, %v1108
    %v1111 = vsel %vm1109, %v1108, %v1106
    %s1112 = sld [smem:[#allocation8 + $0x22]]
    %s1113 = sld [smem:[#allocation8 + $0x53]]
    %v1114 = vstv %s1112
    %v1115 = vstv %s1113
    %v1116 = vsel %vm423, %v1114, %v1115
    %v1117 = vmul.f32 %v1116, %v1110
    %v1118 = vmul.f32 %v1116, %v1111
    %v1119 = vsel %vm482, %v1117, 0.0
    %v1120 = vsel %vm483, %v1118, 0.0
    %v1121 = vadd.f32 %v1103, %v1119
    %v1122 = vadd.f32 %v1104, %v1120
    %v1123 = vsel %vm462, %v1121, 0.0
    %v1124 = vsel %vm463, %v1122, 0.0
    %v1125 = vadd.f32 %v872, %v1123
    %v1126 = vadd.f32 %v873, %v1124
    %1127 = vrot.lane.b32.xlu0 %v416, 99
    %v1128 = vpop.permute.xlu0 %1127
    %1129 = vrot.lane.b32.xlu0 %v417, 99
    %v1130 = vpop.permute.xlu0 %1129
    %vm1131 = vcmp.lt.s32.totalorder %v186, 99
    %v1132 = vsel %vm1131, %v1128, %v1130
    %v1133 = vsel %vm1131, %v1130, %v1128
    %s1134 = sld [smem:[#allocation8 + $0x23]]
    %s1135 = sld [smem:[#allocation8 + $0x54]]
    %v1136 = vstv %s1134
    %v1137 = vstv %s1135
    %v1138 = vsel %vm423, %v1136, %v1137
    %v1139 = vmul.f32 %v1138, %v1132
    %v1140 = vmul.f32 %v1138, %v1133
    %v1141 = vsel %vm434, %v1139, 0.0
    %v1142 = vsel %vm435, %v1140, 0.0
    %v1143 = vadd.f32 %v1141, 0.0
    %v1144 = vadd.f32 %v1142, 0.0
    %1145 = vrot.lane.b32.xlu0 %v416, 98
    %v1146 = vpop.permute.xlu0 %1145
    %1147 = vrot.lane.b32.xlu0 %v417, 98
    %v1148 = vpop.permute.xlu0 %1147
    %vm1149 = vcmp.lt.s32.totalorder %v186, 98
    %v1150 = vsel %vm1149, %v1146, %v1148
    %v1151 = vsel %vm1149, %v1148, %v1146
    %s1152 = sld [smem:[#allocation8 + $0x24]]
    %s1153 = sld [smem:[#allocation8 + $0x55]]
    %v1154 = vstv %s1152
    %v1155 = vstv %s1153
    %v1156 = vsel %vm423, %v1154, %v1155
    %v1157 = vmul.f32 %v1156, %v1150
    %v1158 = vmul.f32 %v1156, %v1151
    %v1159 = vsel %vm442, %v1157, 0.0
    %v1160 = vsel %vm443, %v1158, 0.0
    %v1161 = vadd.f32 %v1143, %v1159
    %v1162 = vadd.f32 %v1144, %v1160
    %1163 = vrot.lane.b32.xlu0 %v416, 97
    %v1164 = vpop.permute.xlu0 %1163
    %1165 = vrot.lane.b32.xlu0 %v417, 97
    %v1166 = vpop.permute.xlu0 %1165
    %vm1167 = vcmp.lt.s32.totalorder %v186, 97
    %v1168 = vsel %vm1167, %v1164, %v1166
    %v1169 = vsel %vm1167, %v1166, %v1164
    %s1170 = sld [smem:[#allocation8 + $0x25]]
    %s1171 = sld [smem:[#allocation8 + $0x56]]
    %v1172 = vstv %s1170
    %v1173 = vstv %s1171
    %v1174 = vsel %vm423, %v1172, %v1173
    %v1175 = vmul.f32 %v1174, %v1168
    %v1176 = vmul.f32 %v1174, %v1169
    %v1177 = vsel %vm450, %v1175, 0.0
    %v1178 = vsel %vm451, %v1176, 0.0
    %v1179 = vadd.f32 %v1161, %v1177
    %v1180 = vadd.f32 %v1162, %v1178
    %1181 = vrot.lane.b32.xlu0 %v416, 96
    %v1182 = vpop.permute.xlu0 %1181
    %1183 = vrot.lane.b32.xlu0 %v417, 96
    %v1184 = vpop.permute.xlu0 %1183
    %vm1185 = vcmp.lt.s32.totalorder %v186, 96
    %v1186 = vsel %vm1185, %v1182, %v1184
    %v1187 = vsel %vm1185, %v1184, %v1182
    %s1188 = sld [smem:[#allocation8 + $0x26]]
    %s1189 = sld [smem:[#allocation8 + $0x57]]
    %v1190 = vstv %s1188
    %v1191 = vstv %s1189
    %v1192 = vsel %vm423, %v1190, %v1191
    %v1193 = vmul.f32 %v1192, %v1186
    %v1194 = vmul.f32 %v1192, %v1187
    %v1195 = vsel %vm458, %v1193, 0.0
    %v1196 = vsel %vm459, %v1194, 0.0
    %v1197 = vadd.f32 %v1179, %v1195
    %v1198 = vadd.f32 %v1180, %v1196
    %1199 = vrot.lane.b32.xlu0 %v416, 95
    %v1200 = vpop.permute.xlu0 %1199
    %1201 = vrot.lane.b32.xlu0 %v417, 95
    %v1202 = vpop.permute.xlu0 %1201
    %vm1203 = vcmp.lt.s32.totalorder %v186, 95
    %v1204 = vsel %vm1203, %v1200, %v1202
    %v1205 = vsel %vm1203, %v1202, %v1200
    %s1206 = sld [smem:[#allocation8 + $0x27]]
    %s1207 = sld [smem:[#allocation8 + $0x58]]
    %v1208 = vstv %s1206
    %v1209 = vstv %s1207
    %v1210 = vsel %vm423, %v1208, %v1209
    %v1211 = vmul.f32 %v1210, %v1204
    %v1212 = vmul.f32 %v1210, %v1205
    %v1213 = vsel %vm466, %v1211, 0.0
    %v1214 = vsel %vm467, %v1212, 0.0
    %v1215 = vadd.f32 %v1197, %v1213
    %v1216 = vadd.f32 %v1198, %v1214
    %1217 = vrot.lane.b32.xlu0 %v416, 94
    %v1218 = vpop.permute.xlu0 %1217
    %1219 = vrot.lane.b32.xlu0 %v417, 94
    %v1220 = vpop.permute.xlu0 %1219
    %vm1221 = vcmp.lt.s32.totalorder %v186, 94
    %v1222 = vsel %vm1221, %v1218, %v1220
    %v1223 = vsel %vm1221, %v1220, %v1218
    %s1224 = sld [smem:[#allocation8 + $0x28]]
    %s1225 = sld [smem:[#allocation8 + $0x59]]
    %v1226 = vstv %s1224
    %v1227 = vstv %s1225
    %v1228 = vsel %vm423, %v1226, %v1227
    %v1229 = vmul.f32 %v1228, %v1222
    %v1230 = vmul.f32 %v1228, %v1223
    %v1231 = vsel %vm474, %v1229, 0.0
    %v1232 = vsel %vm475, %v1230, 0.0
    %v1233 = vadd.f32 %v1215, %v1231
    %v1234 = vadd.f32 %v1216, %v1232
    %1235 = vrot.lane.b32.xlu0 %v416, 93
    %v1236 = vpop.permute.xlu0 %1235
    %1237 = vrot.lane.b32.xlu0 %v417, 93
    %v1238 = vpop.permute.xlu0 %1237
    %vm1239 = vcmp.lt.s32.totalorder %v186, 93
    %v1240 = vsel %vm1239, %v1236, %v1238
    %v1241 = vsel %vm1239, %v1238, %v1236
    %s1242 = sld [smem:[#allocation8 + $0x29]]
    %s1243 = sld [smem:[#allocation8 + $0x5a]]
    %v1244 = vstv %s1242
    %v1245 = vstv %s1243
    %v1246 = vsel %vm423, %v1244, %v1245
    %v1247 = vmul.f32 %v1246, %v1240
    %v1248 = vmul.f32 %v1246, %v1241
    %v1249 = vsel %vm482, %v1247, 0.0
    %v1250 = vsel %vm483, %v1248, 0.0
    %v1251 = vadd.f32 %v1233, %v1249
    %v1252 = vadd.f32 %v1234, %v1250
    %v1253 = vsel %vm470, %v1251, 0.0
    %v1254 = vsel %vm471, %v1252, 0.0
    %v1255 = vadd.f32 %v995, %v1253
    %v1256 = vadd.f32 %v996, %v1254
    %1257 = vrot.lane.b32.xlu0 %v416, 83
    %v1258 = vpop.permute.xlu0 %1257
    %1259 = vrot.lane.b32.xlu0 %v417, 83
    %v1260 = vpop.permute.xlu0 %1259
    %vm1261 = vcmp.lt.s32.totalorder %v186, 83
    %v1262 = vsel %vm1261, %v1258, %v1260
    %v1263 = vsel %vm1261, %v1260, %v1258
    %s1264 = sld [smem:[#allocation8 + $0x2a]]
    %s1265 = sld [smem:[#allocation8 + $0x5b]]
    %v1266 = vstv %s1264
    %v1267 = vstv %s1265
    %v1268 = vsel %vm423, %v1266, %v1267
    %v1269 = vmul.f32 %v1268, %v1262
    %v1270 = vmul.f32 %v1268, %v1263
    %v1271 = vsel %vm434, %v1269, 0.0
    %v1272 = vsel %vm435, %v1270, 0.0
    %v1273 = vadd.f32 %v1271, 0.0
    %v1274 = vadd.f32 %v1272, 0.0
    %1275 = vrot.lane.b32.xlu0 %v416, 82
    %v1276 = vpop.permute.xlu0 %1275
    %1277 = vrot.lane.b32.xlu0 %v417, 82
    %v1278 = vpop.permute.xlu0 %1277
    %vm1279 = vcmp.lt.s32.totalorder %v186, 82
    %v1280 = vsel %vm1279, %v1276, %v1278
    %v1281 = vsel %vm1279, %v1278, %v1276
    %s1282 = sld [smem:[#allocation8 + $0x2b]]
    %s1283 = sld [smem:[#allocation8 + $0x5c]]
    %v1284 = vstv %s1282
    %v1285 = vstv %s1283
    %v1286 = vsel %vm423, %v1284, %v1285
    %v1287 = vmul.f32 %v1286, %v1280
    %v1288 = vmul.f32 %v1286, %v1281
    %v1289 = vsel %vm442, %v1287, 0.0
    %v1290 = vsel %vm443, %v1288, 0.0
    %v1291 = vadd.f32 %v1273, %v1289
    %v1292 = vadd.f32 %v1274, %v1290
    %1293 = vrot.lane.b32.xlu0 %v416, 81
    %v1294 = vpop.permute.xlu0 %1293
    %1295 = vrot.lane.b32.xlu0 %v417, 81
    %v1296 = vpop.permute.xlu0 %1295
    %vm1297 = vcmp.lt.s32.totalorder %v186, 81
    %v1298 = vsel %vm1297, %v1294, %v1296
    %v1299 = vsel %vm1297, %v1296, %v1294
    %s1300 = sld [smem:[#allocation8 + $0x2c]]
    %s1301 = sld [smem:[#allocation8 + $0x5d]]
    %v1302 = vstv %s1300
    %v1303 = vstv %s1301
    %v1304 = vsel %vm423, %v1302, %v1303
    %v1305 = vmul.f32 %v1304, %v1298
    %v1306 = vmul.f32 %v1304, %v1299
    %v1307 = vsel %vm450, %v1305, 0.0
    %v1308 = vsel %vm451, %v1306, 0.0
    %v1309 = vadd.f32 %v1291, %v1307
    %v1310 = vadd.f32 %v1292, %v1308
    %1311 = vrot.lane.b32.xlu0 %v416, 80
    %v1312 = vpop.permute.xlu0 %1311
    %1313 = vrot.lane.b32.xlu0 %v417, 80
    %v1314 = vpop.permute.xlu0 %1313
    %vm1315 = vcmp.lt.s32.totalorder %v186, 80
    %v1316 = vsel %vm1315, %v1312, %v1314
    %v1317 = vsel %vm1315, %v1314, %v1312
    %s1318 = sld [smem:[#allocation8 + $0x2d]]
    %s1319 = sld [smem:[#allocation8 + $0x5e]]
    %v1320 = vstv %s1318
    %v1321 = vstv %s1319
    %v1322 = vsel %vm423, %v1320, %v1321
    %v1323 = vmul.f32 %v1322, %v1316
    %v1324 = vmul.f32 %v1322, %v1317
    %v1325 = vsel %vm458, %v1323, 0.0
    %v1326 = vsel %vm459, %v1324, 0.0
    %v1327 = vadd.f32 %v1309, %v1325
    %v1328 = vadd.f32 %v1310, %v1326
    %1329 = vrot.lane.b32.xlu0 %v416, 79
    %v1330 = vpop.permute.xlu0 %1329
    %1331 = vrot.lane.b32.xlu0 %v417, 79
    %v1332 = vpop.permute.xlu0 %1331
    %vm1333 = vcmp.lt.s32.totalorder %v186, 79
    %v1334 = vsel %vm1333, %v1330, %v1332
    %v1335 = vsel %vm1333, %v1332, %v1330
    %s1336 = sld [smem:[#allocation8 + $0x2e]]
    %s1337 = sld [smem:[#allocation8 + $0x5f]]
    %v1338 = vstv %s1336
    %v1339 = vstv %s1337
    %v1340 = vsel %vm423, %v1338, %v1339
    %v1341 = vmul.f32 %v1340, %v1334
    %v1342 = vmul.f32 %v1340, %v1335
    %v1343 = vsel %vm466, %v1341, 0.0
    %v1344 = vsel %vm467, %v1342, 0.0
    %v1345 = vadd.f32 %v1327, %v1343
    %v1346 = vadd.f32 %v1328, %v1344
    %1347 = vrot.lane.b32.xlu0 %v416, 78
    %v1348 = vpop.permute.xlu0 %1347
    %1349 = vrot.lane.b32.xlu0 %v417, 78
    %v1350 = vpop.permute.xlu0 %1349
    %vm1351 = vcmp.lt.s32.totalorder %v186, 78
    %v1352 = vsel %vm1351, %v1348, %v1350
    %v1353 = vsel %vm1351, %v1350, %v1348
    %s1354 = sld [smem:[#allocation8 + $0x2f]]
    %s1355 = sld [smem:[#allocation8 + $0x60]]
    %v1356 = vstv %s1354
    %v1357 = vstv %s1355
    %v1358 = vsel %vm423, %v1356, %v1357
    %v1359 = vmul.f32 %v1358, %v1352
    %v1360 = vmul.f32 %v1358, %v1353
    %v1361 = vsel %vm474, %v1359, 0.0
    %v1362 = vsel %vm475, %v1360, 0.0
    %v1363 = vadd.f32 %v1345, %v1361
    %v1364 = vadd.f32 %v1346, %v1362
    %1365 = vrot.lane.b32.xlu0 %v416, 77
    %v1366 = vpop.permute.xlu0 %1365
    %1367 = vrot.lane.b32.xlu0 %v417, 77
    %v1368 = vpop.permute.xlu0 %1367
    %vm1369 = vcmp.lt.s32.totalorder %v186, 77
    %v1370 = vsel %vm1369, %v1366, %v1368
    %v1371 = vsel %vm1369, %v1368, %v1366
    %s1372 = sld [smem:[#allocation8 + $0x30]]
    %s1373 = sld [smem:[#allocation8 + $0x61]]
    %v1374 = vstv %s1372
    %v1375 = vstv %s1373
    %v1376 = vsel %vm423, %v1374, %v1375
    %v1377 = vmul.f32 %v1376, %v1370
    %v1378 = vmul.f32 %v1376, %v1371
    %v1379 = vsel %vm482, %v1377, 0.0
    %v1380 = vsel %vm483, %v1378, 0.0
    %v1381 = vadd.f32 %v1363, %v1379
    %v1382 = vadd.f32 %v1364, %v1380
    %v1383 = vsel %vm478, %v1381, 0.0
    %v1384 = vsel %vm479, %v1382, 0.0
    %v1385 = vadd.f32 %v1125, %v1383
    %v1386 = vadd.f32 %v1126, %v1384
    %v1387 = vadd.f32 %v1385, %v1255
    %v1388 = vadd.f32 %v1386, %v1256
    %v1391 = vrot.slane %v1387, 2
    %v1392 = vrot.slane %v1388, 2
    %v1395 = vadd.f32 %v1387, %v1391
    %v1396 = vadd.f32 %v1388, %v1392
    %v1397 = vxor.u32 %v1395, 2147483648
    %v1398 = vxor.u32 %v1396, 2147483648
    %v1399 = vmul.f32 %v1397, 1.442695
    %v1400 = vpow.pop %v1399
    %v1401 = vmul.f32 %v1398, 1.442695
    %v1402 = vpow.pop %v1401
    %v1403 = vadd.f32 %v1400, 1.0
    %v1404 = vadd.f32 %v1402, 1.0
    %v1405 = vrcp.pop %v1403
    %v1406 = vmul.f32 %v1403, %v1405
    %v1407 = vsub.f32 1.0, %v1406
    %v1408 = vmul.f32 %v1405, %v1407
    %v1409 = vadd.f32 %v1405, %v1408
    %vm1410 = vweird.f32 %v1403
    %vm1411 = vweird.f32 %v1405
    %vm1412 = vmor %vm1410, %vm1411
    %v1413 = vsel %vm1412, %v1405, %v1409
    %v1414 = vand.u32 2147483647, %v1403
    %vm1415 = vcmp.eq.f32.partialorder %v1414, 8.507059e+37
    %v1416 = vand.u32 %v1403, 2147483648
    %v1417 = vor.u32 1.1754944e-38, %v1416
    %v1418 = vsel %vm1415, %v1417, %v1413
    %v1419 = vmul.f32 1.0, %v1418
    %v1420 = vrcp.pop %v1404
    %v1421 = vmul.f32 %v1404, %v1420
    %v1422 = vsub.f32 1.0, %v1421
    %v1423 = vmul.f32 %v1420, %v1422
    %v1424 = vadd.f32 %v1420, %v1423
    %vm1425 = vweird.f32 %v1404
    %vm1426 = vweird.f32 %v1420
    %vm1427 = vmor %vm1425, %vm1426
    %v1428 = vsel %vm1427, %v1420, %v1424
    %v1429 = vand.u32 2147483647, %v1404
    %vm1430 = vcmp.eq.f32.partialorder %v1429, 8.507059e+37
    %v1431 = vand.u32 %v1404, 2147483648
    %v1432 = vor.u32 1.1754944e-38, %v1431
    %v1433 = vsel %vm1430, %v1432, %v1428
    %v1434 = vmul.f32 1.0, %v1433
    %v1435 = vmul.f32 %v1419, %v1395
    %v1436 = vmul.f32 %v1434, %v1396
    %v1437 = vperm.slane %v316, 0
    %v1438 = vlaneseq
    %v1439 = vshrl.u32 %v1438, 7
    %1441 = vset.pattern.permute.xlu0 %v1439
    %1442 = vperm.xlu0 %1441, %v1437
    %v1443 = vpop.permute.xlu0 %1442
    %v1444 = vlaneseq
    %v1445 = vshrl.u32 %v1444, 7
    %v1446 = vadd.s32 %v1445, 8
    %1447 = vset.pattern.permute.xlu0 %v1446
    %1448 = vperm.xlu0 %1447, %v1437
    %v1449 = vpop.permute.xlu0 %1448
    %v1450 = vlaneseq
    %v1451 = vshrl.u32 %v1450, 7
    %v1452 = vadd.s32 %v1451, 16
    %1453 = vset.pattern.permute.xlu0 %v1452
    %1454 = vperm.xlu0 %1453, %v1437
    %v1455 = vpop.permute.xlu0 %1454
    %v1456 = vlaneseq
    %v1457 = vshrl.u32 %v1456, 7
    %v1458 = vadd.s32 %v1457, 24
    %1459 = vset.pattern.permute.xlu0 %v1458
    %1460 = vperm.xlu0 %1459, %v1437
    %v1461 = vpop.permute.xlu0 %1460
    %v1462 = vperm.slane %v316, 1
    %v1463 = vlaneseq
    %v1464 = vshrl.u32 %v1463, 7
    %1466 = vset.pattern.permute.xlu0 %v1464
    %1467 = vperm.xlu0 %1466, %v1462
    %v1468 = vpop.permute.xlu0 %1467
    %v1469 = vlaneseq
    %v1470 = vshrl.u32 %v1469, 7
    %v1471 = vadd.s32 %v1470, 8
    %1472 = vset.pattern.permute.xlu0 %v1471
    %1473 = vperm.xlu0 %1472, %v1462
    %v1474 = vpop.permute.xlu0 %1473
    %v1475 = vlaneseq
    %v1476 = vshrl.u32 %v1475, 7
    %v1477 = vadd.s32 %v1476, 16
    %1478 = vset.pattern.permute.xlu0 %v1477
    %1479 = vperm.xlu0 %1478, %v1462
    %v1480 = vpop.permute.xlu0 %1479
    %v1481 = vlaneseq
    %v1482 = vshrl.u32 %v1481, 7
    %v1483 = vadd.s32 %v1482, 24
    %1484 = vset.pattern.permute.xlu0 %v1483
    %1485 = vperm.xlu0 %1484, %v1462
    %v1486 = vpop.permute.xlu0 %1485
    %v1487 = vmul.f32 %v1443, %v98
    %v1488 = vmul.f32 %v1443, %v99
    %v1489 = vmul.f32 %v1449, %v100
    %v1490 = vmul.f32 %v1449, %v101
    %v1491 = vmul.f32 %v1455, %v102
    %v1492 = vmul.f32 %v1455, %v103
    %v1493 = vmul.f32 %v1461, %v104
    %v1494 = vmul.f32 %v1461, %v105
    %v1495 = vmul.f32 %v1468, %v106
    %v1496 = vmul.f32 %v1468, %v107
    %v1497 = vmul.f32 %v1474, %v108
    %v1498 = vmul.f32 %v1474, %v109
    %v1499 = vmul.f32 %v1480, %v110
    %v1500 = vmul.f32 %v1480, %v111
    %v1501 = vmul.f32 %v1486, %v112
    %v1502 = vmul.f32 %v1486, %v113
    %v1505 = vrot.slane %v1436, 7
    %vm1506 = vcmask 1040384
    %v1507 = vsel %vm1506, %v1435, %v1505
    %v1508 = vsel %vm207, %v1435, %v1505
    %v1509 = vrot.slane %v1508, 1
    %v1510 = vperm.slane %v1507, 0
    %v1511 = vperm.slane %v1507, 1
    %v1512 = vperm.slane %v1509, 0
    %v1513 = vperm.slane %v1509, 1
    %v1518 = vadd.f32 %v1487, %v1510
    %v1519 = vadd.f32 %v1488, %v1511
    %v1520 = vadd.f32 %v1489, %v1510
    %v1521 = vadd.f32 %v1490, %v1511
    %v1522 = vadd.f32 %v1491, %v1510
    %v1523 = vadd.f32 %v1492, %v1511
    %v1524 = vadd.f32 %v1493, %v1510
    %v1525 = vadd.f32 %v1494, %v1511
    %v1526 = vadd.f32 %v1495, %v1512
    %v1527 = vadd.f32 %v1496, %v1513
    %v1528 = vadd.f32 %v1497, %v1512
    %v1529 = vadd.f32 %v1498, %v1513
    %v1530 = vadd.f32 %v1499, %v1512
    %v1531 = vadd.f32 %v1500, %v1513
    %v1532 = vadd.f32 %v1501, %v1512
    %v1533 = vadd.f32 %v1502, %v1513
    %v1534 = vxor.u32 %v1518, 2147483648
    %v1535 = vxor.u32 %v1519, 2147483648
    %v1536 = vxor.u32 %v1520, 2147483648
    %v1537 = vxor.u32 %v1521, 2147483648
    %v1538 = vxor.u32 %v1522, 2147483648
    %v1539 = vxor.u32 %v1523, 2147483648
    %v1540 = vxor.u32 %v1524, 2147483648
    %v1541 = vxor.u32 %v1525, 2147483648
    %v1542 = vxor.u32 %v1526, 2147483648
    %v1543 = vxor.u32 %v1527, 2147483648
    %v1544 = vxor.u32 %v1528, 2147483648
    %v1545 = vxor.u32 %v1529, 2147483648
    %v1546 = vxor.u32 %v1530, 2147483648
    %v1547 = vxor.u32 %v1531, 2147483648
    %v1548 = vxor.u32 %v1532, 2147483648
    %v1549 = vxor.u32 %v1533, 2147483648
    %v1550 = vmul.f32 %v1534, 1.442695
    %v1551 = vpow.pop %v1550
    %v1552 = vmul.f32 %v1535, 1.442695
    %v1553 = vpow.pop %v1552
    %v1554 = vmul.f32 %v1536, 1.442695
    %v1555 = vpow.pop %v1554
    %v1556 = vmul.f32 %v1537, 1.442695
    %v1557 = vpow.pop %v1556
    %v1558 = vmul.f32 %v1538, 1.442695
    %v1559 = vpow.pop %v1558
    %v1560 = vmul.f32 %v1539, 1.442695
    %v1561 = vpow.pop %v1560
    %v1562 = vmul.f32 %v1540, 1.442695
    %v1563 = vpow.pop %v1562
    %v1564 = vmul.f32 %v1541, 1.442695
    %v1565 = vpow.pop %v1564
    %v1566 = vmul.f32 %v1542, 1.442695
    %v1567 = vpow.pop %v1566
    %v1568 = vmul.f32 %v1543, 1.442695
    %v1569 = vpow.pop %v1568
    %v1570 = vmul.f32 %v1544, 1.442695
    %v1571 = vpow.pop %v1570
    %v1572 = vmul.f32 %v1545, 1.442695
    %v1573 = vpow.pop %v1572
    %v1574 = vmul.f32 %v1546, 1.442695
    %v1575 = vpow.pop %v1574
    %v1576 = vmul.f32 %v1547, 1.442695
    %v1577 = vpow.pop %v1576
    %v1578 = vmul.f32 %v1548, 1.442695
    %v1579 = vpow.pop %v1578
    %v1580 = vmul.f32 %v1549, 1.442695
    %v1581 = vpow.pop %v1580
    %v1582 = vadd.f32 %v1551, 1.0
    %v1583 = vadd.f32 %v1553, 1.0
    %v1584 = vadd.f32 %v1555, 1.0
    %v1585 = vadd.f32 %v1557, 1.0
    %v1586 = vadd.f32 %v1559, 1.0
    %v1587 = vadd.f32 %v1561, 1.0
    %v1588 = vadd.f32 %v1563, 1.0
    %v1589 = vadd.f32 %v1565, 1.0
    %v1590 = vadd.f32 %v1567, 1.0
    %v1591 = vadd.f32 %v1569, 1.0
    %v1592 = vadd.f32 %v1571, 1.0
    %v1593 = vadd.f32 %v1573, 1.0
    %v1594 = vadd.f32 %v1575, 1.0
    %v1595 = vadd.f32 %v1577, 1.0
    %v1596 = vadd.f32 %v1579, 1.0
    %v1597 = vadd.f32 %v1581, 1.0
    %v1598 = vrcp.pop %v1582
    %v1599 = vmul.f32 %v1582, %v1598
    %v1600 = vsub.f32 1.0, %v1599
    %v1601 = vmul.f32 %v1598, %v1600
    %v1602 = vadd.f32 %v1598, %v1601
    %vm1603 = vweird.f32 %v1582
    %vm1604 = vweird.f32 %v1598
    %vm1605 = vmor %vm1603, %vm1604
    %v1606 = vsel %vm1605, %v1598, %v1602
    %v1607 = vand.u32 2147483647, %v1582
    %vm1608 = vcmp.eq.f32.partialorder %v1607, 8.507059e+37
    %v1609 = vand.u32 %v1582, 2147483648
    %v1610 = vor.u32 1.1754944e-38, %v1609
    %v1611 = vsel %vm1608, %v1610, %v1606
    %v1612 = vmul.f32 1.0, %v1611
    %v1613 = vrcp.pop %v1583
    %v1614 = vmul.f32 %v1583, %v1613
    %v1615 = vsub.f32 1.0, %v1614
    %v1616 = vmul.f32 %v1613, %v1615
    %v1617 = vadd.f32 %v1613, %v1616
    %vm1618 = vweird.f32 %v1583
    %vm1619 = vweird.f32 %v1613
    %vm1620 = vmor %vm1618, %vm1619
    %v1621 = vsel %vm1620, %v1613, %v1617
    %v1622 = vand.u32 2147483647, %v1583
    %vm1623 = vcmp.eq.f32.partialorder %v1622, 8.507059e+37
    %v1624 = vand.u32 %v1583, 2147483648
    %v1625 = vor.u32 1.1754944e-38, %v1624
    %v1626 = vsel %vm1623, %v1625, %v1621
    %v1627 = vmul.f32 1.0, %v1626
    %v1628 = vrcp.pop %v1584
    %v1629 = vmul.f32 %v1584, %v1628
    %v1630 = vsub.f32 1.0, %v1629
    %v1631 = vmul.f32 %v1628, %v1630
    %v1632 = vadd.f32 %v1628, %v1631
    %vm1633 = vweird.f32 %v1584
    %vm1634 = vweird.f32 %v1628
    %vm1635 = vmor %vm1633, %vm1634
    %v1636 = vsel %vm1635, %v1628, %v1632
    %v1637 = vand.u32 2147483647, %v1584
    %vm1638 = vcmp.eq.f32.partialorder %v1637, 8.507059e+37
    %v1639 = vand.u32 %v1584, 2147483648
    %v1640 = vor.u32 1.1754944e-38, %v1639
    %v1641 = vsel %vm1638, %v1640, %v1636
    %v1642 = vmul.f32 1.0, %v1641
    %v1643 = vrcp.pop %v1585
    %v1644 = vmul.f32 %v1585, %v1643
    %v1645 = vsub.f32 1.0, %v1644
    %v1646 = vmul.f32 %v1643, %v1645
    %v1647 = vadd.f32 %v1643, %v1646
    %vm1648 = vweird.f32 %v1585
    %vm1649 = vweird.f32 %v1643
    %vm1650 = vmor %vm1648, %vm1649
    %v1651 = vsel %vm1650, %v1643, %v1647
    %v1652 = vand.u32 2147483647, %v1585
    %vm1653 = vcmp.eq.f32.partialorder %v1652, 8.507059e+37
    %v1654 = vand.u32 %v1585, 2147483648
    %v1655 = vor.u32 1.1754944e-38, %v1654
    %v1656 = vsel %vm1653, %v1655, %v1651
    %v1657 = vmul.f32 1.0, %v1656
    %v1658 = vrcp.pop %v1586
    %v1659 = vmul.f32 %v1586, %v1658
    %v1660 = vsub.f32 1.0, %v1659
    %v1661 = vmul.f32 %v1658, %v1660
    %v1662 = vadd.f32 %v1658, %v1661
    %vm1663 = vweird.f32 %v1586
    %vm1664 = vweird.f32 %v1658
    %vm1665 = vmor %vm1663, %vm1664
    %v1666 = vsel %vm1665, %v1658, %v1662
    %v1667 = vand.u32 2147483647, %v1586
    %vm1668 = vcmp.eq.f32.partialorder %v1667, 8.507059e+37
    %v1669 = vand.u32 %v1586, 2147483648
    %v1670 = vor.u32 1.1754944e-38, %v1669
    %v1671 = vsel %vm1668, %v1670, %v1666
    %v1672 = vmul.f32 1.0, %v1671
    %v1673 = vrcp.pop %v1587
    %v1674 = vmul.f32 %v1587, %v1673
    %v1675 = vsub.f32 1.0, %v1674
    %v1676 = vmul.f32 %v1673, %v1675
    %v1677 = vadd.f32 %v1673, %v1676
    %vm1678 = vweird.f32 %v1587
    %vm1679 = vweird.f32 %v1673
    %vm1680 = vmor %vm1678, %vm1679
    %v1681 = vsel %vm1680, %v1673, %v1677
    %v1682 = vand.u32 2147483647, %v1587
    %vm1683 = vcmp.eq.f32.partialorder %v1682, 8.507059e+37
    %v1684 = vand.u32 %v1587, 2147483648
    %v1685 = vor.u32 1.1754944e-38, %v1684
    %v1686 = vsel %vm1683, %v1685, %v1681
    %v1687 = vmul.f32 1.0, %v1686
    %v1688 = vrcp.pop %v1588
    %v1689 = vmul.f32 %v1588, %v1688
    %v1690 = vsub.f32 1.0, %v1689
    %v1691 = vmul.f32 %v1688, %v1690
    %v1692 = vadd.f32 %v1688, %v1691
    %vm1693 = vweird.f32 %v1588
    %vm1694 = vweird.f32 %v1688
    %vm1695 = vmor %vm1693, %vm1694
    %v1696 = vsel %vm1695, %v1688, %v1692
    %v1697 = vand.u32 2147483647, %v1588
    %vm1698 = vcmp.eq.f32.partialorder %v1697, 8.507059e+37
    %v1699 = vand.u32 %v1588, 2147483648
    %v1700 = vor.u32 1.1754944e-38, %v1699
    %v1701 = vsel %vm1698, %v1700, %v1696
    %v1702 = vmul.f32 1.0, %v1701
    %v1703 = vrcp.pop %v1589
    %v1704 = vmul.f32 %v1589, %v1703
    %v1705 = vsub.f32 1.0, %v1704
    %v1706 = vmul.f32 %v1703, %v1705
    %v1707 = vadd.f32 %v1703, %v1706
    %vm1708 = vweird.f32 %v1589
    %vm1709 = vweird.f32 %v1703
    %vm1710 = vmor %vm1708, %vm1709
    %v1711 = vsel %vm1710, %v1703, %v1707
    %v1712 = vand.u32 2147483647, %v1589
    %vm1713 = vcmp.eq.f32.partialorder %v1712, 8.507059e+37
    %v1714 = vand.u32 %v1589, 2147483648
    %v1715 = vor.u32 1.1754944e-38, %v1714
    %v1716 = vsel %vm1713, %v1715, %v1711
    %v1717 = vmul.f32 1.0, %v1716
    %v1718 = vrcp.pop %v1590
    %v1719 = vmul.f32 %v1590, %v1718
    %v1720 = vsub.f32 1.0, %v1719
    %v1721 = vmul.f32 %v1718, %v1720
    %v1722 = vadd.f32 %v1718, %v1721
    %vm1723 = vweird.f32 %v1590
    %vm1724 = vweird.f32 %v1718
    %vm1725 = vmor %vm1723, %vm1724
    %v1726 = vsel %vm1725, %v1718, %v1722
    %v1727 = vand.u32 2147483647, %v1590
    %vm1728 = vcmp.eq.f32.partialorder %v1727, 8.507059e+37
    %v1729 = vand.u32 %v1590, 2147483648
    %v1730 = vor.u32 1.1754944e-38, %v1729
    %v1731 = vsel %vm1728, %v1730, %v1726
    %v1732 = vmul.f32 1.0, %v1731
    %v1733 = vrcp.pop %v1591
    %v1734 = vmul.f32 %v1591, %v1733
    %v1735 = vsub.f32 1.0, %v1734
    %v1736 = vmul.f32 %v1733, %v1735
    %v1737 = vadd.f32 %v1733, %v1736
    %vm1738 = vweird.f32 %v1591
    %vm1739 = vweird.f32 %v1733
    %vm1740 = vmor %vm1738, %vm1739
    %v1741 = vsel %vm1740, %v1733, %v1737
    %v1742 = vand.u32 2147483647, %v1591
    %vm1743 = vcmp.eq.f32.partialorder %v1742, 8.507059e+37
    %v1744 = vand.u32 %v1591, 2147483648
    %v1745 = vor.u32 1.1754944e-38, %v1744
    %v1746 = vsel %vm1743, %v1745, %v1741
    %v1747 = vmul.f32 1.0, %v1746
    %v1748 = vrcp.pop %v1592
    %v1749 = vmul.f32 %v1592, %v1748
    %v1750 = vsub.f32 1.0, %v1749
    %v1751 = vmul.f32 %v1748, %v1750
    %v1752 = vadd.f32 %v1748, %v1751
    %vm1753 = vweird.f32 %v1592
    %vm1754 = vweird.f32 %v1748
    %vm1755 = vmor %vm1753, %vm1754
    %v1756 = vsel %vm1755, %v1748, %v1752
    %v1757 = vand.u32 2147483647, %v1592
    %vm1758 = vcmp.eq.f32.partialorder %v1757, 8.507059e+37
    %v1759 = vand.u32 %v1592, 2147483648
    %v1760 = vor.u32 1.1754944e-38, %v1759
    %v1761 = vsel %vm1758, %v1760, %v1756
    %v1762 = vmul.f32 1.0, %v1761
    %v1763 = vrcp.pop %v1593
    %v1764 = vmul.f32 %v1593, %v1763
    %v1765 = vsub.f32 1.0, %v1764
    %v1766 = vmul.f32 %v1763, %v1765
    %v1767 = vadd.f32 %v1763, %v1766
    %vm1768 = vweird.f32 %v1593
    %vm1769 = vweird.f32 %v1763
    %vm1770 = vmor %vm1768, %vm1769
    %v1771 = vsel %vm1770, %v1763, %v1767
    %v1772 = vand.u32 2147483647, %v1593
    %vm1773 = vcmp.eq.f32.partialorder %v1772, 8.507059e+37
    %v1774 = vand.u32 %v1593, 2147483648
    %v1775 = vor.u32 1.1754944e-38, %v1774
    %v1776 = vsel %vm1773, %v1775, %v1771
    %v1777 = vmul.f32 1.0, %v1776
    %v1778 = vrcp.pop %v1594
    %v1779 = vmul.f32 %v1594, %v1778
    %v1780 = vsub.f32 1.0, %v1779
    %v1781 = vmul.f32 %v1778, %v1780
    %v1782 = vadd.f32 %v1778, %v1781
    %vm1783 = vweird.f32 %v1594
    %vm1784 = vweird.f32 %v1778
    %vm1785 = vmor %vm1783, %vm1784
    %v1786 = vsel %vm1785, %v1778, %v1782
    %v1787 = vand.u32 2147483647, %v1594
    %vm1788 = vcmp.eq.f32.partialorder %v1787, 8.507059e+37
    %v1789 = vand.u32 %v1594, 2147483648
    %v1790 = vor.u32 1.1754944e-38, %v1789
    %v1791 = vsel %vm1788, %v1790, %v1786
    %v1792 = vmul.f32 1.0, %v1791
    %v1793 = vrcp.pop %v1595
    %v1794 = vmul.f32 %v1595, %v1793
    %v1795 = vsub.f32 1.0, %v1794
    %v1796 = vmul.f32 %v1793, %v1795
    %v1797 = vadd.f32 %v1793, %v1796
    %vm1798 = vweird.f32 %v1595
    %vm1799 = vweird.f32 %v1793
    %vm1800 = vmor %vm1798, %vm1799
    %v1801 = vsel %vm1800, %v1793, %v1797
    %v1802 = vand.u32 2147483647, %v1595
    %vm1803 = vcmp.eq.f32.partialorder %v1802, 8.507059e+37
    %v1804 = vand.u32 %v1595, 2147483648
    %v1805 = vor.u32 1.1754944e-38, %v1804
    %v1806 = vsel %vm1803, %v1805, %v1801
    %v1807 = vmul.f32 1.0, %v1806
    %v1808 = vrcp.pop %v1596
    %v1809 = vmul.f32 %v1596, %v1808
    %v1810 = vsub.f32 1.0, %v1809
    %v1811 = vmul.f32 %v1808, %v1810
    %v1812 = vadd.f32 %v1808, %v1811
    %vm1813 = vweird.f32 %v1596
    %vm1814 = vweird.f32 %v1808
    %vm1815 = vmor %vm1813, %vm1814
    %v1816 = vsel %vm1815, %v1808, %v1812
    %v1817 = vand.u32 2147483647, %v1596
    %vm1818 = vcmp.eq.f32.partialorder %v1817, 8.507059e+37
    %v1819 = vand.u32 %v1596, 2147483648
    %v1820 = vor.u32 1.1754944e-38, %v1819
    %v1821 = vsel %vm1818, %v1820, %v1816
    %v1822 = vmul.f32 1.0, %v1821
    %v1823 = vrcp.pop %v1597
    %v1824 = vmul.f32 %v1597, %v1823
    %v1825 = vsub.f32 1.0, %v1824
    %v1826 = vmul.f32 %v1823, %v1825
    %v1827 = vadd.f32 %v1823, %v1826
    %vm1828 = vweird.f32 %v1597
    %vm1829 = vweird.f32 %v1823
    %vm1830 = vmor %vm1828, %vm1829
    %v1831 = vsel %vm1830, %v1823, %v1827
    %v1832 = vand.u32 2147483647, %v1597
    %vm1833 = vcmp.eq.f32.partialorder %v1832, 8.507059e+37
    %v1834 = vand.u32 %v1597, 2147483648
    %v1835 = vor.u32 1.1754944e-38, %v1834
    %v1836 = vsel %vm1833, %v1835, %v1831
    %v1837 = vmul.f32 1.0, %v1836
    %v1838 = vmul.f32 %v1612, %v98
    %v1839 = vmul.f32 %v1627, %v99
    %v1840 = vmul.f32 %v1642, %v100
    %v1841 = vmul.f32 %v1657, %v101
    %v1842 = vmul.f32 %v1672, %v102
    %v1843 = vmul.f32 %v1687, %v103
    %v1844 = vmul.f32 %v1702, %v104
    %v1845 = vmul.f32 %v1717, %v105
    %v1846 = vmul.f32 %v1732, %v106
    %v1847 = vmul.f32 %v1747, %v107
    %v1848 = vmul.f32 %v1762, %v108
    %v1849 = vmul.f32 %v1777, %v109
    %v1850 = vmul.f32 %v1792, %v110
    %v1851 = vmul.f32 %v1807, %v111
    %v1852 = vmul.f32 %v1822, %v112
    %v1853 = vmul.f32 %v1837, %v113
    %1854 = vst [vmem:[#allocation9] sm:$0xff] %v1838
    %1855 = vst [vmem:[#allocation9 + $0x8] sm:$0xff] %v1839
    %1856 = vst [vmem:[#allocation9 + $0x10] sm:$0xff] %v1840
    %1857 = vst [vmem:[#allocation9 + $0x18] sm:$0xff] %v1841
    %1858 = vst [vmem:[#allocation9 + $0x20] sm:$0xff] %v1842
    %1859 = vst [vmem:[#allocation9 + $0x28] sm:$0xff] %v1843
    %1860 = vst [vmem:[#allocation9 + $0x30] sm:$0xff] %v1844
    %1861 = vst [vmem:[#allocation9 + $0x38] sm:$0xff] %v1845
    %1862 = vst [vmem:[#allocation9 + $0x40] sm:$0xff] %v1846
    %1863 = vst [vmem:[#allocation9 + $0x48] sm:$0xff] %v1847
    %1864 = vst [vmem:[#allocation9 + $0x50] sm:$0xff] %v1848
    %1865 = vst [vmem:[#allocation9 + $0x58] sm:$0xff] %v1849
    %1866 = vst [vmem:[#allocation9 + $0x60] sm:$0xff] %v1850
    %1867 = vst [vmem:[#allocation9 + $0x68] sm:$0xff] %v1851
    %1868 = vst [vmem:[#allocation9 + $0x70] sm:$0xff] %v1852
    %1869 = vst [vmem:[#allocation9 + $0x78] sm:$0xff] %v1853
    // Predicated region
    $region34: #{tpu_custom_call.1} parent=1 // pred_check
      _
    $region35: #{tpu_custom_call.1} parent=1 // pred_check_branch
      %1871 = sbr.rel (0) target = $region37
    $region36: #{tpu_custom_call.1} parent=1 // pred_region
      %1873 = vsyncadd [#allocation4], 0
      %s1874 = sshll.u32 [#allocation9], 4
      %s1875 = int_to_ptr.vmem [resolvable:$true] %s1874
      %s1876 = sshll.u32 %s5, 4
      %s1877 = int_to_ptr.hbm [resolvable:$true] %s1876
      %1882 = dma.vmem_to_hbm [thread:$0]  %s1875, 2048, %s1877, [#allocation4], 256, 256, 16
    $region37: #{tpu_custom_call.1} parent=1 // pred_fallthru
      _
    // Predicated region
    $region38: #{tpu_custom_call.1} parent=1 // pred_check
      _
    $region39: #{tpu_custom_call.1} parent=1 // pred_check_branch
      %1884 = sbr.rel (0) target = $region41
    $region40: #{tpu_custom_call.1} parent=1 // pred_region
      %1886 = dma.done [#allocation4], 2048
    $region41: #{tpu_custom_call.1} parent=1 // pred_fallthru
      _
    %1887 = vsyncpa [#allocation3], 1
    %1888 = vsyncpa [#allocation7], 1
    %1889 = vsyncpa [#allocation4], 1
    %1890 = vsyncpa [#allocation5], 1

</llo_original>
